<compile_context>
chip_gen: v7x
topology: tpu7x:2x2x1
jax: 0.10.0
libtpu: 0.0.40
codegen_flags: <defaults>
</compile_context>

<pallas_src>
import jax
import jax.numpy as jnp
import numpy as np
from jax import lax
from jax.experimental import pallas as pl
from jax.experimental.pallas import tpu as pltpu

KSIZE = 7   # spatial-gate Conv1d kernel size
PAD = 3     # spatial-gate Conv1d padding
KPAD = 8    # KSIZE padded to a sublane multiple for the MXU contraction


def cbam_kernel(x_ref, w1_ref, b1_ref, w2_ref, b2_ref, wsp_ref, bsp_ref, o_ref):
    x = x_ref[...]                                         # (Bt, C, L) f32
    Bt, C, L = x.shape

    # ---- channel gate: AdaptiveAvgPool1d(1) + 1x1 convs + sigmoid.
    # Tiny (Cr x C) contractions on a serial chain: keep off the MXU and do
    # broadcast-multiply + lane reduce on the VPU/XLU.
    pooled = jnp.mean(x, axis=2)                                        # (Bt, C)
    w1 = w1_ref[...]                                                    # (Cr, C)
    h = jnp.sum(w1[None, :, :] * pooled[:, None, :], axis=-1)           # (Bt, Cr)
    h = jnp.maximum(h + b1_ref[...], 0.0)                               # ReLU
    w2 = w2_ref[...]                                                    # (C, Cr)
    g = jnp.sum(w2[None, :, :] * h[:, None, :], axis=-1)                # (Bt, C)
    ch_gate = jax.nn.sigmoid(g + b2_ref[...])                           # (Bt, C)

    # ---- spatial gate: Conv1d(C -> 1, kernel=7, padding=3).
    # Channel contraction for every tap in a single batched MXU matmul:
    #   taps[b, k, l] = sum_c wsp[k, c] * x[b, c, l]
    # (wsp rows k >= KSIZE are zero padding).
    wsp = wsp_ref[...]                                                  # (KPAD, C)
    wb = jnp.broadcast_to(wsp[None, :, :], (Bt, KPAD, C))               # (Bt, KPAD, C)
    taps = jnp.einsum('bkc,bcl->bkl', wb, x,
                      preferred_element_type=jnp.float32)               # (Bt, KPAD, L)

    # Shift / boundary-mask only the reduced (Bt, L) rows.  The boundary mask
    # depends only on l, so it lives on a (1, L) lane iota.
    lane = lax.broadcasted_iota(jnp.int32, (1, L), 1)                   # (1, L)
    acc = jnp.zeros((Bt, L), jnp.float32)
    for k in range(KSIZE):
        d = k - PAD                                        # offset in [-3, 3]
        tap = taps[:, k, :]                                # (Bt, L)
        if d != 0:
            # tap[b, l] -> contributes at output l' = l - d, i.e. we need
            # tap[b, l + d] at position l (lane roll; wraparound masked below).
            tap = pltpu.roll(tap, shift=(-d) % L, axis=1)
        valid = (lane + d >= 0) & (lane + d < L)           # (1, L)
        acc = acc + jnp.where(valid, tap, 0.0)
    sp_gate = jax.nn.sigmoid(acc + bsp_ref[0, 0])                       # (Bt, L)

    # ---- combine: channel_wise + spatial_wise == (ch_gate + sp_gate) * x
    gate = ch_gate[:, :, None] + sp_gate[:, None, :]                    # (Bt, C, L)
    o_ref[...] = (gate * x).astype(o_ref.dtype)


def _pick_batch_tile(B, C, L, itemsize, target_tile_bytes=2 << 20):
    """Largest batch block Bt that divides B, keeps the tile <= target bytes,
    and (when possible) leaves a grid of >= 2 steps so both TensorCores get
    work on megacore parts."""
    divisors = [d for d in range(1, B + 1) if B % d == 0]
    fitting = [d for d in divisors if d * C * L * itemsize <= target_tile_bytes]
    if not fitting:
        fitting = [1]
    multi_step = [d for d in fitting if B // d >= 2]
    return max(multi_step) if multi_step else max(fitting)


def cbam_forward(x, params, target_tile_bytes=2 << 20):
    B, C, L = x.shape
    w1, b1, w2, b2, wsp, bsp = params
    Cr = w1.shape[0]

    # Spatial conv weight (C, KSIZE) -> (KPAD, C): transposed + zero-padded on
    # the host so the in-kernel contraction is a clean (8, C) x (C, L) matmul.
    wsp_pad = jnp.pad(jnp.transpose(wsp), ((0, KPAD - KSIZE), (0, 0)))

    Bt = _pick_batch_tile(B, C, L, x.dtype.itemsize, target_tile_bytes)
    grid = (B // Bt,)

    def param_spec(shape):
        # Grid-invariant 2-D parameter blocks (whole array each step).
        return pl.BlockSpec(shape, lambda b: (0, 0))

    return pl.pallas_call(
        cbam_kernel,
        out_shape=jax.ShapeDtypeStruct((B, C, L), x.dtype),
        grid_spec=pltpu.PrefetchScalarGridSpec(
            num_scalar_prefetch=0,
            grid=grid,
            in_specs=[
                pl.BlockSpec((Bt, C, L), lambda b: (b, 0, 0)),  # x (batch-blocked tile)
                param_spec((Cr, C)),                            # w1 (1x1 conv, squeezed)
                param_spec((1, Cr)),                            # b1
                param_spec((C, Cr)),                            # w2
                param_spec((1, C)),                             # b2
                param_spec((KPAD, C)),                          # spatial conv weight (padded)
                param_spec((1, 1)),                             # spatial conv bias
            ],
            out_specs=pl.BlockSpec((Bt, C, L), lambda b: (b, 0, 0)),
        ),
        compiler_params=pltpu.CompilerParams(dimension_semantics=("parallel",)),
    )(x, w1, b1, w2, b2, wsp_pad, bsp)


def cbam_ref(x, params):
    """Pure-JAX reference matching the PyTorch module semantics."""
    w1, b1, w2, b2, wsp, bsp = params
    B, C, L = x.shape
    pooled = jnp.mean(x, axis=2)                                       # (B, C)
    h = jnp.maximum(pooled @ w1.T + b1, 0.0)                           # (B, Cr)
    g = h @ w2.T + b2                                                  # (B, C)
    ch_gate = jax.nn.sigmoid(g)[:, :, None]                            # (B, C, 1)
    xp = jnp.pad(x, ((0, 0), (0, 0), (PAD, PAD)))
    conv = jnp.zeros((B, L), jnp.float32)
    for k in range(KSIZE):
        conv = conv + jnp.einsum('c,bcl->bl', wsp[:, k], xp[:, :, k:k + L])
    sp_gate = jax.nn.sigmoid(conv + bsp[0, 0])[:, None, :]             # (B, 1, L)
    return ch_gate * x + sp_gate * x


if __name__ == "__main__":
    B, C, L, R = 8, 32, 128, 16
    Cr = C // R

    key = jax.random.PRNGKey(0)
    keys = jax.random.split(key, 7)
    x = jax.random.normal(keys[0], (B, C, L), jnp.float32)

    def uinit(k, shape, fan_in):
        bound = 1.0 / np.sqrt(fan_in)
        return jax.random.uniform(k, shape, jnp.float32, -bound, bound)

    # Conv1d(C, Cr, k=1): weight (Cr, C, 1) stored squeezed as (Cr, C); bias (1, Cr)
    w1 = uinit(keys[1], (Cr, C), C)
    b1 = uinit(keys[2], (1, Cr), C)
    # Conv1d(Cr, C, k=1): weight (C, Cr, 1) -> (C, Cr); bias (1, C)
    w2 = uinit(keys[3], (C, Cr), Cr)
    b2 = uinit(keys[4], (1, C), Cr)
    # Conv1d(C, 1, k=7): weight (1, C, 7) -> (C, 7); bias (1, 1)
    wsp = uinit(keys[5], (C, KSIZE), C * KSIZE)
    bsp = uinit(keys[6], (1, 1), C * KSIZE)

    params = (w1, b1, w2, b2, wsp, bsp)

    out = cbam_forward(x, params)
    out = jax.block_until_ready(out)

    ref = cbam_ref(x, params)
    np.testing.assert_allclose(np.asarray(out), np.asarray(ref), atol=1e-5, rtol=1e-5)
    print("KERNEL_OK")
</pallas_src>

<mosaic_0001>
module attributes {stable_mosaic.version = 11 : i64} {
  func.func @cbam_kernel(%arg0: i32, %arg1: memref<4x32x128xf32, #tpu.memory_space<vmem>>, %arg2: memref<2x32xf32, #tpu.memory_space<vmem>>, %arg3: memref<1x2xf32, #tpu.memory_space<vmem>>, %arg4: memref<32x2xf32, #tpu.memory_space<vmem>>, %arg5: memref<1x32xf32, #tpu.memory_space<vmem>>, %arg6: memref<8x32xf32, #tpu.memory_space<vmem>>, %arg7: memref<1x1xf32, #tpu.memory_space<vmem>>, %arg8: memref<4x32x128xf32, #tpu.memory_space<vmem>>) attributes {dimension_semantics = [#tpu.dimension_semantics<parallel>], iteration_bounds = array<i64: 2>, scalar_prefetch = 0 : i64, scratch_operands = 0 : i64, tpu.core_type = #tpu.core_type<tc>, window_params = [{transform_indices = @transform_0, window_bounds = array<i64: 4, 32, 128>}, {pipeline_mode = #tpu.pipeline_mode<synchronous>, transform_indices = @transform_1, window_bounds = array<i64: 2, 32>}, {pipeline_mode = #tpu.pipeline_mode<synchronous>, transform_indices = @transform_2, window_bounds = array<i64: 1, 2>}, {pipeline_mode = #tpu.pipeline_mode<synchronous>, transform_indices = @transform_3, window_bounds = array<i64: 32, 2>}, {pipeline_mode = #tpu.pipeline_mode<synchronous>, transform_indices = @transform_4, window_bounds = array<i64: 1, 32>}, {pipeline_mode = #tpu.pipeline_mode<synchronous>, transform_indices = @transform_5, window_bounds = array<i64: 8, 32>}, {pipeline_mode = #tpu.pipeline_mode<synchronous>, transform_indices = @transform_6, window_bounds = array<i64: 1, 1>}, {transform_indices = @transform_7, window_bounds = array<i64: 4, 32, 128>}]} {
    %c0 = arith.constant 0 : index
    %c0_0 = arith.constant 0 : index
    %c0_1 = arith.constant 0 : index
    %0 = vector.load %arg1[%c0, %c0_0, %c0_1] : memref<4x32x128xf32, #tpu.memory_space<vmem>>, vector<4x32x128xf32>
    %cst = arith.constant dense<0.000000e+00> : vector<4x32xf32>
    %1 = vector.multi_reduction <add>, %0, %cst [2] : vector<4x32x128xf32> to vector<4x32xf32>
    %cst_2 = arith.constant 1.280000e+02 : f32
    %2 = vector.broadcast %cst_2 : f32 to vector<4x32xf32>
    %3 = arith.divf %1, %2 : vector<4x32xf32>
    %c0_3 = arith.constant 0 : index
    %c0_4 = arith.constant 0 : index
    %4 = vector.load %arg2[%c0_3, %c0_4] : memref<2x32xf32, #tpu.memory_space<vmem>>, vector<2x32xf32>
    %5 = vector.shape_cast %4 : vector<2x32xf32> to vector<1x2x32xf32>
    %6 = vector.shape_cast %3 : vector<4x32xf32> to vector<4x1x32xf32>
    %7 = vector.broadcast %5 : vector<1x2x32xf32> to vector<4x2x32xf32>
    %8 = vector.broadcast %6 : vector<4x1x32xf32> to vector<4x2x32xf32>
    %9 = arith.mulf %7, %8 : vector<4x2x32xf32>
    %cst_5 = arith.constant dense<0.000000e+00> : vector<4x2xf32>
    %10 = vector.multi_reduction <add>, %9, %cst_5 [2] : vector<4x2x32xf32> to vector<4x2xf32>
    %c0_6 = arith.constant 0 : index
    %c0_7 = arith.constant 0 : index
    %11 = vector.load %arg3[%c0_6, %c0_7] : memref<1x2xf32, #tpu.memory_space<vmem>>, vector<1x2xf32>
    %12 = vector.broadcast %11 : vector<1x2xf32> to vector<4x2xf32>
    %13 = arith.addf %10, %12 : vector<4x2xf32>
    %cst_8 = arith.constant 0.000000e+00 : f32
    %14 = vector.broadcast %cst_8 : f32 to vector<4x2xf32>
    %15 = arith.maximumf %13, %14 : vector<4x2xf32>
    %c0_9 = arith.constant 0 : index
    %c0_10 = arith.constant 0 : index
    %16 = vector.load %arg4[%c0_9, %c0_10] : memref<32x2xf32, #tpu.memory_space<vmem>>, vector<32x2xf32>
    %17 = vector.shape_cast %16 : vector<32x2xf32> to vector<1x32x2xf32>
    %18 = vector.shape_cast %15 : vector<4x2xf32> to vector<4x1x2xf32>
    %19 = vector.broadcast %17 : vector<1x32x2xf32> to vector<4x32x2xf32>
    %20 = vector.broadcast %18 : vector<4x1x2xf32> to vector<4x32x2xf32>
    %21 = arith.mulf %19, %20 : vector<4x32x2xf32>
    %cst_11 = arith.constant dense<0.000000e+00> : vector<4x32xf32>
    %22 = vector.multi_reduction <add>, %21, %cst_11 [2] : vector<4x32x2xf32> to vector<4x32xf32>
    %c0_12 = arith.constant 0 : index
    %c0_13 = arith.constant 0 : index
    %23 = vector.load %arg5[%c0_12, %c0_13] : memref<1x32xf32, #tpu.memory_space<vmem>>, vector<1x32xf32>
    %24 = vector.broadcast %23 : vector<1x32xf32> to vector<4x32xf32>
    %25 = arith.addf %22, %24 : vector<4x32xf32>
    %26 = arith.negf %25 : vector<4x32xf32>
    %27 = math.exp %26 : vector<4x32xf32>
    %cst_14 = arith.constant 1.000000e+00 : f32
    %28 = vector.broadcast %cst_14 : f32 to vector<4x32xf32>
    %29 = arith.addf %28, %27 : vector<4x32xf32>
    %30 = arith.divf %28, %29 : vector<4x32xf32>
    %c0_15 = arith.constant 0 : index
    %c0_16 = arith.constant 0 : index
    %31 = vector.load %arg6[%c0_15, %c0_16] : memref<8x32xf32, #tpu.memory_space<vmem>>, vector<8x32xf32>
    %32 = vector.shape_cast %31 : vector<8x32xf32> to vector<1x8x32xf32>
    %33 = vector.shape_cast %32 : vector<1x8x32xf32> to vector<1x8x32xf32>
    %34 = vector.broadcast %33 : vector<1x8x32xf32> to vector<4x8x32xf32>
    "tpu.trace_start"() <{level = 10 : i32, message = "bkc,bcl->bkl"}> : () -> ()
    %cst_17 = arith.constant dense<0.000000e+00> : vector<4x8x128xf32>
    %35 = tpu.matmul %34, %0, %cst_17 {dimension_numbers = #tpu.dot_dimension_numbers<[2], [1], [1], [2], [0, 0, 0, 1, 1, 2], [0], [0]>} : vector<4x8x32xf32>, vector<4x32x128xf32>, vector<4x8x128xf32> -> vector<4x8x128xf32>
    "tpu.trace_stop"() : () -> ()
    %36 = tpu.iota {dimensions = array<i32: 1>} : vector<1x128xi32>
    %cst_18 = arith.constant 0.000000e+00 : f32
    %37 = vector.broadcast %cst_18 : f32 to vector<4x128xf32>
    %38 = vector.extract_strided_slice %35 {offsets = [0, 0, 0], sizes = [4, 1, 128], strides = [1, 1, 1]} : vector<4x8x128xf32> to vector<4x1x128xf32>
    %39 = vector.shape_cast %38 : vector<4x1x128xf32> to vector<4x128xf32>
    %c3_i32 = arith.constant 3 : i32
    %40 = tpu.dynamic_rotate %39 by %c3_i32 dim 1 : vector<4x128xf32>, i32 -> vector<4x128xf32>
    %c-3_i32 = arith.constant -3 : i32
    %41 = vector.broadcast %c-3_i32 : i32 to vector<1x128xi32>
    %42 = arith.addi %36, %41 : vector<1x128xi32>
    %c0_i32 = arith.constant 0 : i32
    %43 = vector.broadcast %c0_i32 : i32 to vector<1x128xi32>
    %44 = arith.cmpi sge, %42, %43 : vector<1x128xi32>
    %c-3_i32_19 = arith.constant -3 : i32
    %45 = vector.broadcast %c-3_i32_19 : i32 to vector<1x128xi32>
    %46 = arith.addi %36, %45 : vector<1x128xi32>
    %c128_i32 = arith.constant 128 : i32
    %47 = vector.broadcast %c128_i32 : i32 to vector<1x128xi32>
    %48 = arith.cmpi slt, %46, %47 : vector<1x128xi32>
    %49 = arith.andi %44, %48 : vector<1x128xi1>
    %cst_20 = arith.constant 0.000000e+00 : f32
    %50 = vector.shape_cast %49 : vector<1x128xi1> to vector<1x128xi1>
    %51 = vector.broadcast %50 : vector<1x128xi1> to vector<4x128xi1>
    %52 = vector.broadcast %cst_20 : f32 to vector<4x128xf32>
    %53 = arith.select %51, %40, %52 : vector<4x128xi1>, vector<4x128xf32>
    %54 = arith.addf %37, %53 : vector<4x128xf32>
    %55 = vector.extract_strided_slice %35 {offsets = [0, 1, 0], sizes = [4, 1, 128], strides = [1, 1, 1]} : vector<4x8x128xf32> to vector<4x1x128xf32>
    %56 = vector.shape_cast %55 : vector<4x1x128xf32> to vector<4x128xf32>
    %c2_i32 = arith.constant 2 : i32
    %57 = tpu.dynamic_rotate %56 by %c2_i32 dim 1 : vector<4x128xf32>, i32 -> vector<4x128xf32>
    %c-2_i32 = arith.constant -2 : i32
    %58 = vector.broadcast %c-2_i32 : i32 to vector<1x128xi32>
    %59 = arith.addi %36, %58 : vector<1x128xi32>
    %c0_i32_21 = arith.constant 0 : i32
    %60 = vector.broadcast %c0_i32_21 : i32 to vector<1x128xi32>
    %61 = arith.cmpi sge, %59, %60 : vector<1x128xi32>
    %c-2_i32_22 = arith.constant -2 : i32
    %62 = vector.broadcast %c-2_i32_22 : i32 to vector<1x128xi32>
    %63 = arith.addi %36, %62 : vector<1x128xi32>
    %c128_i32_23 = arith.constant 128 : i32
    %64 = vector.broadcast %c128_i32_23 : i32 to vector<1x128xi32>
    %65 = arith.cmpi slt, %63, %64 : vector<1x128xi32>
    %66 = arith.andi %61, %65 : vector<1x128xi1>
    %cst_24 = arith.constant 0.000000e+00 : f32
    %67 = vector.shape_cast %66 : vector<1x128xi1> to vector<1x128xi1>
    %68 = vector.broadcast %67 : vector<1x128xi1> to vector<4x128xi1>
    %69 = vector.broadcast %cst_24 : f32 to vector<4x128xf32>
    %70 = arith.select %68, %57, %69 : vector<4x128xi1>, vector<4x128xf32>
    %71 = arith.addf %54, %70 : vector<4x128xf32>
    %72 = vector.extract_strided_slice %35 {offsets = [0, 2, 0], sizes = [4, 1, 128], strides = [1, 1, 1]} : vector<4x8x128xf32> to vector<4x1x128xf32>
    %73 = vector.shape_cast %72 : vector<4x1x128xf32> to vector<4x128xf32>
    %c1_i32 = arith.constant 1 : i32
    %74 = tpu.dynamic_rotate %73 by %c1_i32 dim 1 : vector<4x128xf32>, i32 -> vector<4x128xf32>
    %c-1_i32 = arith.constant -1 : i32
    %75 = vector.broadcast %c-1_i32 : i32 to vector<1x128xi32>
    %76 = arith.addi %36, %75 : vector<1x128xi32>
    %c0_i32_25 = arith.constant 0 : i32
    %77 = vector.broadcast %c0_i32_25 : i32 to vector<1x128xi32>
    %78 = arith.cmpi sge, %76, %77 : vector<1x128xi32>
    %c-1_i32_26 = arith.constant -1 : i32
    %79 = vector.broadcast %c-1_i32_26 : i32 to vector<1x128xi32>
    %80 = arith.addi %36, %79 : vector<1x128xi32>
    %c128_i32_27 = arith.constant 128 : i32
    %81 = vector.broadcast %c128_i32_27 : i32 to vector<1x128xi32>
    %82 = arith.cmpi slt, %80, %81 : vector<1x128xi32>
    %83 = arith.andi %78, %82 : vector<1x128xi1>
    %cst_28 = arith.constant 0.000000e+00 : f32
    %84 = vector.shape_cast %83 : vector<1x128xi1> to vector<1x128xi1>
    %85 = vector.broadcast %84 : vector<1x128xi1> to vector<4x128xi1>
    %86 = vector.broadcast %cst_28 : f32 to vector<4x128xf32>
    %87 = arith.select %85, %74, %86 : vector<4x128xi1>, vector<4x128xf32>
    %88 = arith.addf %71, %87 : vector<4x128xf32>
    %89 = vector.extract_strided_slice %35 {offsets = [0, 3, 0], sizes = [4, 1, 128], strides = [1, 1, 1]} : vector<4x8x128xf32> to vector<4x1x128xf32>
    %90 = vector.shape_cast %89 : vector<4x1x128xf32> to vector<4x128xf32>
    %c0_i32_29 = arith.constant 0 : i32
    %91 = vector.broadcast %c0_i32_29 : i32 to vector<1x128xi32>
    %92 = arith.addi %36, %91 : vector<1x128xi32>
    %c0_i32_30 = arith.constant 0 : i32
    %93 = vector.broadcast %c0_i32_30 : i32 to vector<1x128xi32>
    %94 = arith.cmpi sge, %92, %93 : vector<1x128xi32>
    %c0_i32_31 = arith.constant 0 : i32
    %95 = vector.broadcast %c0_i32_31 : i32 to vector<1x128xi32>
    %96 = arith.addi %36, %95 : vector<1x128xi32>
    %c128_i32_32 = arith.constant 128 : i32
    %97 = vector.broadcast %c128_i32_32 : i32 to vector<1x128xi32>
    %98 = arith.cmpi slt, %96, %97 : vector<1x128xi32>
    %99 = arith.andi %94, %98 : vector<1x128xi1>
    %cst_33 = arith.constant 0.000000e+00 : f32
    %100 = vector.shape_cast %99 : vector<1x128xi1> to vector<1x128xi1>
    %101 = vector.broadcast %100 : vector<1x128xi1> to vector<4x128xi1>
    %102 = vector.broadcast %cst_33 : f32 to vector<4x128xf32>
    %103 = arith.select %101, %90, %102 : vector<4x128xi1>, vector<4x128xf32>
    %104 = arith.addf %88, %103 : vector<4x128xf32>
    %105 = vector.extract_strided_slice %35 {offsets = [0, 4, 0], sizes = [4, 1, 128], strides = [1, 1, 1]} : vector<4x8x128xf32> to vector<4x1x128xf32>
    %106 = vector.shape_cast %105 : vector<4x1x128xf32> to vector<4x128xf32>
    %c127_i32 = arith.constant 127 : i32
    %107 = tpu.dynamic_rotate %106 by %c127_i32 dim 1 : vector<4x128xf32>, i32 -> vector<4x128xf32>
    %c1_i32_34 = arith.constant 1 : i32
    %108 = vector.broadcast %c1_i32_34 : i32 to vector<1x128xi32>
    %109 = arith.addi %36, %108 : vector<1x128xi32>
    %c0_i32_35 = arith.constant 0 : i32
    %110 = vector.broadcast %c0_i32_35 : i32 to vector<1x128xi32>
    %111 = arith.cmpi sge, %109, %110 : vector<1x128xi32>
    %c1_i32_36 = arith.constant 1 : i32
    %112 = vector.broadcast %c1_i32_36 : i32 to vector<1x128xi32>
    %113 = arith.addi %36, %112 : vector<1x128xi32>
    %c128_i32_37 = arith.constant 128 : i32
    %114 = vector.broadcast %c128_i32_37 : i32 to vector<1x128xi32>
    %115 = arith.cmpi slt, %113, %114 : vector<1x128xi32>
    %116 = arith.andi %111, %115 : vector<1x128xi1>
    %cst_38 = arith.constant 0.000000e+00 : f32
    %117 = vector.shape_cast %116 : vector<1x128xi1> to vector<1x128xi1>
    %118 = vector.broadcast %117 : vector<1x128xi1> to vector<4x128xi1>
    %119 = vector.broadcast %cst_38 : f32 to vector<4x128xf32>
    %120 = arith.select %118, %107, %119 : vector<4x128xi1>, vector<4x128xf32>
    %121 = arith.addf %104, %120 : vector<4x128xf32>
    %122 = vector.extract_strided_slice %35 {offsets = [0, 5, 0], sizes = [4, 1, 128], strides = [1, 1, 1]} : vector<4x8x128xf32> to vector<4x1x128xf32>
    %123 = vector.shape_cast %122 : vector<4x1x128xf32> to vector<4x128xf32>
    %c126_i32 = arith.constant 126 : i32
    %124 = tpu.dynamic_rotate %123 by %c126_i32 dim 1 : vector<4x128xf32>, i32 -> vector<4x128xf32>
    %c2_i32_39 = arith.constant 2 : i32
    %125 = vector.broadcast %c2_i32_39 : i32 to vector<1x128xi32>
    %126 = arith.addi %36, %125 : vector<1x128xi32>
    %c0_i32_40 = arith.constant 0 : i32
    %127 = vector.broadcast %c0_i32_40 : i32 to vector<1x128xi32>
    %128 = arith.cmpi sge, %126, %127 : vector<1x128xi32>
    %c2_i32_41 = arith.constant 2 : i32
    %129 = vector.broadcast %c2_i32_41 : i32 to vector<1x128xi32>
    %130 = arith.addi %36, %129 : vector<1x128xi32>
    %c128_i32_42 = arith.constant 128 : i32
    %131 = vector.broadcast %c128_i32_42 : i32 to vector<1x128xi32>
    %132 = arith.cmpi slt, %130, %131 : vector<1x128xi32>
    %133 = arith.andi %128, %132 : vector<1x128xi1>
    %cst_43 = arith.constant 0.000000e+00 : f32
    %134 = vector.shape_cast %133 : vector<1x128xi1> to vector<1x128xi1>
    %135 = vector.broadcast %134 : vector<1x128xi1> to vector<4x128xi1>
    %136 = vector.broadcast %cst_43 : f32 to vector<4x128xf32>
    %137 = arith.select %135, %124, %136 : vector<4x128xi1>, vector<4x128xf32>
    %138 = arith.addf %121, %137 : vector<4x128xf32>
    %139 = vector.extract_strided_slice %35 {offsets = [0, 6, 0], sizes = [4, 1, 128], strides = [1, 1, 1]} : vector<4x8x128xf32> to vector<4x1x128xf32>
    %140 = vector.shape_cast %139 : vector<4x1x128xf32> to vector<4x128xf32>
    %c125_i32 = arith.constant 125 : i32
    %141 = tpu.dynamic_rotate %140 by %c125_i32 dim 1 : vector<4x128xf32>, i32 -> vector<4x128xf32>
    %c3_i32_44 = arith.constant 3 : i32
    %142 = vector.broadcast %c3_i32_44 : i32 to vector<1x128xi32>
    %143 = arith.addi %36, %142 : vector<1x128xi32>
    %c0_i32_45 = arith.constant 0 : i32
    %144 = vector.broadcast %c0_i32_45 : i32 to vector<1x128xi32>
    %145 = arith.cmpi sge, %143, %144 : vector<1x128xi32>
    %c3_i32_46 = arith.constant 3 : i32
    %146 = vector.broadcast %c3_i32_46 : i32 to vector<1x128xi32>
    %147 = arith.addi %36, %146 : vector<1x128xi32>
    %c128_i32_47 = arith.constant 128 : i32
    %148 = vector.broadcast %c128_i32_47 : i32 to vector<1x128xi32>
    %149 = arith.cmpi slt, %147, %148 : vector<1x128xi32>
    %150 = arith.andi %145, %149 : vector<1x128xi1>
    %cst_48 = arith.constant 0.000000e+00 : f32
    %151 = vector.shape_cast %150 : vector<1x128xi1> to vector<1x128xi1>
    %152 = vector.broadcast %151 : vector<1x128xi1> to vector<4x128xi1>
    %153 = vector.broadcast %cst_48 : f32 to vector<4x128xf32>
    %154 = arith.select %152, %141, %153 : vector<4x128xi1>, vector<4x128xf32>
    %155 = arith.addf %138, %154 : vector<4x128xf32>
    %c0_49 = arith.constant 0 : index
    %c0_50 = arith.constant 0 : index
    %156 = vector.load %arg7[%c0_49, %c0_50] : memref<1x1xf32, #tpu.memory_space<vmem>>, vector<1x1xf32>
    %157 = vector.extract %156[0, 0] : f32 from vector<1x1xf32>
    %158 = vector.broadcast %157 : f32 to vector<4x128xf32>
    %159 = arith.addf %155, %158 : vector<4x128xf32>
    %160 = arith.negf %159 : vector<4x128xf32>
    %161 = math.exp %160 : vector<4x128xf32>
    %cst_51 = arith.constant 1.000000e+00 : f32
    %162 = vector.broadcast %cst_51 : f32 to vector<4x128xf32>
    %163 = arith.addf %162, %161 : vector<4x128xf32>
    %164 = arith.divf %162, %163 : vector<4x128xf32>
    %165 = vector.shape_cast %30 : vector<4x32xf32> to vector<4x32x1xf32>
    %166 = vector.shape_cast %164 : vector<4x128xf32> to vector<4x1x128xf32>
    %167 = vector.broadcast %165 : vector<4x32x1xf32> to vector<4x32x128xf32>
    %168 = vector.broadcast %166 : vector<4x1x128xf32> to vector<4x32x128xf32>
    %169 = arith.addf %167, %168 : vector<4x32x128xf32>
    %170 = arith.mulf %169, %0 : vector<4x32x128xf32>
    %c0_52 = arith.constant 0 : index
    %c0_53 = arith.constant 0 : index
    %c0_54 = arith.constant 0 : index
    %171 = vector.load %arg8[%c0_52, %c0_53, %c0_54] : memref<4x32x128xf32, #tpu.memory_space<vmem>>, vector<4x32x128xf32>
    tpu.vector_store %arg8[%c0_52, %c0_53, %c0_54], %170 {strides = array<i32>} : memref<4x32x128xf32, #tpu.memory_space<vmem>>, vector<4x32x128xf32>,
    return
  }
  func.func @transform_0(%arg0: i32) -> (i32, i32, i32) {
    %c0_i32 = arith.constant 0 : i32
    %c0_i32_0 = arith.constant 0 : i32
    %c0_i32_1 = arith.constant 0 : i32
    return %arg0, %c0_i32, %c0_i32_0 : i32, i32, i32
  }
  func.func @transform_1(%arg0: i32) -> (i32, i32) {
    %c0_i32 = arith.constant 0 : i32
    %c0_i32_0 = arith.constant 0 : i32
    %c0_i32_1 = arith.constant 0 : i32
    return %c0_i32, %c0_i32_0 : i32, i32
  }
  func.func @transform_2(%arg0: i32) -> (i32, i32) {
    %c0_i32 = arith.constant 0 : i32
    %c0_i32_0 = arith.constant 0 : i32
    %c0_i32_1 = arith.constant 0 : i32
    return %c0_i32, %c0_i32_0 : i32, i32
  }
  func.func @transform_3(%arg0: i32) -> (i32, i32) {
    %c0_i32 = arith.constant 0 : i32
    %c0_i32_0 = arith.constant 0 : i32
    %c0_i32_1 = arith.constant 0 : i32
    return %c0_i32, %c0_i32_0 : i32, i32
  }
  func.func @transform_4(%arg0: i32) -> (i32, i32) {
    %c0_i32 = arith.constant 0 : i32
    %c0_i32_0 = arith.constant 0 : i32
    %c0_i32_1 = arith.constant 0 : i32
    return %c0_i32, %c0_i32_0 : i32, i32
  }
  func.func @transform_5(%arg0: i32) -> (i32, i32) {
    %c0_i32 = arith.constant 0 : i32
    %c0_i32_0 = arith.constant 0 : i32
    %c0_i32_1 = arith.constant 0 : i32
    return %c0_i32, %c0_i32_0 : i32, i32
  }
  func.func @transform_6(%arg0: i32) -> (i32, i32) {
    %c0_i32 = arith.constant 0 : i32
    %c0_i32_0 = arith.constant 0 : i32
    %c0_i32_1 = arith.constant 0 : i32
    return %c0_i32, %c0_i32_0 : i32, i32
  }
  func.func @transform_7(%arg0: i32) -> (i32, i32, i32) {
    %c0_i32 = arith.constant 0 : i32
    %c0_i32_0 = arith.constant 0 : i32
    %c0_i32_1 = arith.constant 0 : i32
    return %arg0, %c0_i32, %c0_i32_0 : i32, i32, i32
  }
}

</mosaic_0001>

<llo_original>
// kernel: tpu_custom_call.1
$region0: #{tpu_custom_call.1}
  #allocation0 [shape = 'u32[]', space=smem, size = 0x4, offset = 0x4, fixed_abs, tag = 'smem constant byte address 0x4 - core index']
  #allocation1 [shape = 'u32[144,128]{1,0:T(1,128)}', space=vmem, size = 0x12000, scoped, tag = 'internal scratch']
  #allocation2 [shape = 'f32[1,1]{1,0:T(1,128)S(1)}', space=vmem, size = 0x200, scoped, tag = 'scoped memory for tpu_custom_call.1']
  %s0 = inlined_call_operand.hbm [shape: f32[8,32,128], index: 0, kind: input, shape index: {}]
  %s1 = inlined_call_operand.vmem [shape: f32[2,32], index: 1, kind: input, shape index: {}]
  %s2 = inlined_call_operand.vmem [shape: f32[1,2], index: 2, kind: input, shape index: {}]
  %s3 = inlined_call_operand.vmem [shape: f32[32,2], index: 3, kind: input, shape index: {}]
  %s4 = inlined_call_operand.vmem [shape: f32[1,32], index: 4, kind: input, shape index: {}]
  %s5 = inlined_call_operand.vmem [shape: f32[8,32], index: 5, kind: input, shape index: {}]
  %s6 = inlined_call_operand.<no memory space> [shape: f32[1,1], index: 6, kind: input, shape index: {}]
  %s7 = inlined_call_operand.hbm [shape: f32[8,32,128], index: 7, kind: output, shape index: {}]
  %s8 = sld [smem:[#allocation0]]
  $region65: #{tpu_custom_call.1} parent=0
    _
  %s10 = ssub.s32 1, %s8
  %s11 = scalar_select 0, %s10, %s8
  %v12 = vstv %s6
  %13 = vst [vmem:[#allocation2] sm:$0x1] %v12
  $region1: #{tpu_custom_call.1} parent=0
    #allocation3 [shape = 'u8[131072]{0}', space=vmem, size = 0x20000, scoped, tag = 'input window, operand 0']
    #allocation4 [shape = 's32[2]{0}', space=sflag, size = 0x8, scoped, tag = 'scoped memory for tpu_custom_call.1']
    #allocation5 [shape = 's32[2]{0}', space=sflag, size = 0x8, scoped, tag = 'scoped memory for tpu_custom_call.1']
    #allocation6 [shape = 'u8[131072]{0}', space=vmem, size = 0x20000, scoped, tag = 'output window, operand 0']
    %14 = vsyncpa [#allocation4], 0
    %s15 = scalar_lea.sflag [#allocation4], 1
    %16 = vsyncpa %s15, 0
    %17 = vsyncpa [#allocation5], 0
    %s18 = scalar_lea.sflag [#allocation5], 1
    %19 = vsyncpa %s18, 0
    loop: start=0, step=1, limit=4
    $region2: #{tpu_custom_call.1} parent=1 // loop_pre_header
      _
    $region3: #{tpu_custom_call.1} parent=1 // loop_header
      %s21 = sphi 0, %s25
      %p22 = scmp.ge.s32.totalorder %s21, 4
      %s31 = sphi 0, %s33
      %s34 = sphi 0, %s31
      %s35 = sphi 0, %s34
      %s51 = sphi 0, %s35
      %s55 = sphi 0, %s55
      %s57 = sphi 0, %s55
      %s58 = sphi 0, %s57
      %s72 = sphi 0, %s58
      %s76 = sphi 0, %s76
      %s78 = sphi 0, %s76
      %s79 = sphi 0, %s78
      %s93 = sphi 0, %s79
      %s97 = sphi 0, %s97
      %s99 = sphi 0, %s97
      %s100 = sphi 0, %s99
      %s114 = sphi 0, %s100
      %s118 = sphi 0, %s118
      %s120 = sphi 0, %s118
      %s121 = sphi 0, %s120
      %s135 = sphi 0, %s121
      %s139 = sphi 0, %s139
      %s141 = sphi 0, %s139
      %s142 = sphi 0, %s141
      %s156 = sphi 0, %s142
      %s160 = sphi 0, %s160
      %s162 = sphi 0, %s160
      %s163 = sphi 0, %s162
      %s177 = sphi 0, %s163
      %s183 = sphi 0, %s185
      %s186 = sphi 0, %s183
      %s187 = sphi 0, %s186
      %s203 = sphi 0, %s187
    $region4: #{tpu_custom_call.1} parent=1 // loop_header_branch
      %24 = sbr.rel (%p22) target = $region8
    $region5: #{tpu_custom_call.1} parent=1 // loop_body
      %s26 = ssub.s32 %s21, 1
      %s27 = ssub.s32 %s21, 2
      %s28 = sadd.s32 %s21, 1
      %s29 = ssub.s32 %s21, %s28
      %p30 = scmp.eq.s32.totalorder %s29, 0
      %s32 = sadd.s32 %s31, 1
      %s33 = scalar_select %p30, %s31, %s32
      %p36 = pneg %p30
      %p37 = scmp.eq.s32.totalorder %s21, 1
      %p38 = por %p36, %p37
      %p39 = scmp.ne.s32.totalorder %s31, %s34
      %p40 = scmp.eq.s32.totalorder %s21, 0
      %p41 = por %p39, %p40
      %p42 = scmp.ne.s32.totalorder %s31, %s34
      %p43 = scmp.eq.s32.totalorder %s26, 1
      %p44 = por %p42, %p43
      %p45 = scmp.ne.s32.totalorder %s34, %s35
      %p46 = scmp.eq.s32.totalorder %s26, 0
      %p47 = por %p45, %p46
      %p48 = scmp.ne.s32.totalorder %s34, %s35
      %p49 = scmp.eq.s32.totalorder %s27, 1
      %p50 = por %p48, %p49
      %p52 = scmp.ne.s32.totalorder %s35, %s51
      %p53 = scmp.eq.s32.totalorder %s27, 0
      %p54 = por %p52, %p53
      %s56 = sadd.s32 %s55, 1
      %p59 = scmp.eq.s32.totalorder %s21, 1
      %p60 = scmp.ne.s32.totalorder %s55, %s57
      %p61 = scmp.eq.s32.totalorder %s21, 0
      %p62 = por %p60, %p61
      %p63 = scmp.ne.s32.totalorder %s55, %s57
      %p64 = scmp.eq.s32.totalorder %s26, 1
      %p65 = por %p63, %p64
      %p66 = scmp.ne.s32.totalorder %s57, %s58
      %p67 = scmp.eq.s32.totalorder %s26, 0
      %p68 = por %p66, %p67
      %p69 = scmp.ne.s32.totalorder %s57, %s58
      %p70 = scmp.eq.s32.totalorder %s27, 1
      %p71 = por %p69, %p70
      %p73 = scmp.ne.s32.totalorder %s58, %s72
      %p74 = scmp.eq.s32.totalorder %s27, 0
      %p75 = por %p73, %p74
      %s77 = sadd.s32 %s76, 1
      %p80 = scmp.eq.s32.totalorder %s21, 1
      %p81 = scmp.ne.s32.totalorder %s76, %s78
      %p82 = scmp.eq.s32.totalorder %s21, 0
      %p83 = por %p81, %p82
      %p84 = scmp.ne.s32.totalorder %s76, %s78
      %p85 = scmp.eq.s32.totalorder %s26, 1
      %p86 = por %p84, %p85
      %p87 = scmp.ne.s32.totalorder %s78, %s79
      %p88 = scmp.eq.s32.totalorder %s26, 0
      %p89 = por %p87, %p88
      %p90 = scmp.ne.s32.totalorder %s78, %s79
      %p91 = scmp.eq.s32.totalorder %s27, 1
      %p92 = por %p90, %p91
      %p94 = scmp.ne.s32.totalorder %s79, %s93
      %p95 = scmp.eq.s32.totalorder %s27, 0
      %p96 = por %p94, %p95
      %s98 = sadd.s32 %s97, 1
      %p101 = scmp.eq.s32.totalorder %s21, 1
      %p102 = scmp.ne.s32.totalorder %s97, %s99
      %p103 = scmp.eq.s32.totalorder %s21, 0
      %p104 = por %p102, %p103
      %p105 = scmp.ne.s32.totalorder %s97, %s99
      %p106 = scmp.eq.s32.totalorder %s26, 1
      %p107 = por %p105, %p106
      %p108 = scmp.ne.s32.totalorder %s99, %s100
      %p109 = scmp.eq.s32.totalorder %s26, 0
      %p110 = por %p108, %p109
      %p111 = scmp.ne.s32.totalorder %s99, %s100
      %p112 = scmp.eq.s32.totalorder %s27, 1
      %p113 = por %p111, %p112
      %p115 = scmp.ne.s32.totalorder %s100, %s114
      %p116 = scmp.eq.s32.totalorder %s27, 0
      %p117 = por %p115, %p116
      %s119 = sadd.s32 %s118, 1
      %p122 = scmp.eq.s32.totalorder %s21, 1
      %p123 = scmp.ne.s32.totalorder %s118, %s120
      %p124 = scmp.eq.s32.totalorder %s21, 0
      %p125 = por %p123, %p124
      %p126 = scmp.ne.s32.totalorder %s118, %s120
      %p127 = scmp.eq.s32.totalorder %s26, 1
      %p128 = por %p126, %p127
      %p129 = scmp.ne.s32.totalorder %s120, %s121
      %p130 = scmp.eq.s32.totalorder %s26, 0
      %p131 = por %p129, %p130
      %p132 = scmp.ne.s32.totalorder %s120, %s121
      %p133 = scmp.eq.s32.totalorder %s27, 1
      %p134 = por %p132, %p133
      %p136 = scmp.ne.s32.totalorder %s121, %s135
      %p137 = scmp.eq.s32.totalorder %s27, 0
      %p138 = por %p136, %p137
      %s140 = sadd.s32 %s139, 1
      %p143 = scmp.eq.s32.totalorder %s21, 1
      %p144 = scmp.ne.s32.totalorder %s139, %s141
      %p145 = scmp.eq.s32.totalorder %s21, 0
      %p146 = por %p144, %p145
      %p147 = scmp.ne.s32.totalorder %s139, %s141
      %p148 = scmp.eq.s32.totalorder %s26, 1
      %p149 = por %p147, %p148
      %p150 = scmp.ne.s32.totalorder %s141, %s142
      %p151 = scmp.eq.s32.totalorder %s26, 0
      %p152 = por %p150, %p151
      %p153 = scmp.ne.s32.totalorder %s141, %s142
      %p154 = scmp.eq.s32.totalorder %s27, 1
      %p155 = por %p153, %p154
      %p157 = scmp.ne.s32.totalorder %s142, %s156
      %p158 = scmp.eq.s32.totalorder %s27, 0
      %p159 = por %p157, %p158
      %s161 = sadd.s32 %s160, 1
      %p164 = scmp.eq.s32.totalorder %s21, 1
      %p165 = scmp.ne.s32.totalorder %s160, %s162
      %p166 = scmp.eq.s32.totalorder %s21, 0
      %p167 = por %p165, %p166
      %p168 = scmp.ne.s32.totalorder %s160, %s162
      %p169 = scmp.eq.s32.totalorder %s26, 1
      %p170 = por %p168, %p169
      %p171 = scmp.ne.s32.totalorder %s162, %s163
      %p172 = scmp.eq.s32.totalorder %s26, 0
      %p173 = por %p171, %p172
      %p174 = scmp.ne.s32.totalorder %s162, %s163
      %p175 = scmp.eq.s32.totalorder %s27, 1
      %p176 = por %p174, %p175
      %p178 = scmp.ne.s32.totalorder %s163, %s177
      %p179 = scmp.eq.s32.totalorder %s27, 0
      %p180 = por %p178, %p179
      %s181 = ssub.s32 %s21, %s28
      %p182 = scmp.eq.s32.totalorder %s181, 0
      %s184 = sadd.s32 %s183, 1
      %s185 = scalar_select %p182, %s183, %s184
      %p188 = pneg %p182
      %p189 = scmp.eq.s32.totalorder %s21, 1
      %p190 = por %p188, %p189
      %p191 = scmp.ne.s32.totalorder %s183, %s186
      %p192 = scmp.eq.s32.totalorder %s21, 0
      %p193 = por %p191, %p192
      %p194 = scmp.ne.s32.totalorder %s183, %s186
      %p195 = scmp.eq.s32.totalorder %s26, 1
      %p196 = por %p194, %p195
      %p197 = scmp.ne.s32.totalorder %s186, %s187
      %p198 = scmp.eq.s32.totalorder %s26, 0
      %p199 = por %p197, %p198
      %p200 = scmp.ne.s32.totalorder %s186, %s187
      %p201 = scmp.eq.s32.totalorder %s27, 1
      %p202 = por %p200, %p201
      %p204 = scmp.ne.s32.totalorder %s187, %s203
      %p205 = scmp.eq.s32.totalorder %s27, 0
      %p206 = por %p204, %p205
      %p207 = scmp.le.s32.totalorder 1, %s21
      %p208 = scmp.lt.s32.totalorder %s21, 3
      %p209 = pnand %p207, %p208
      %p210 = pneg %p209
      // Predicated region
      $region9: #{tpu_custom_call.1} parent=5 // pred_check
        _
      $region10: #{tpu_custom_call.1} parent=5 // pred_check_branch
        %212 = sbr.rel (%p209) target = $region12
      $region11: #{tpu_custom_call.1} parent=5 // pred_region
        %s213 = ssub.s32 %s21, 1
        // Predicated region
        $region13: #{tpu_custom_call.1} parent=11 // pred_check
          %p214 = pneg %p68
        $region14: #{tpu_custom_call.1} parent=11 // pred_check_branch
          %216 = sbr.rel (%p214) target = $region16
        $region15: #{tpu_custom_call.1} parent=11 // pred_region
          _
        $region16: #{tpu_custom_call.1} parent=11 // pred_fallthru
          _
        // Predicated region
        $region17: #{tpu_custom_call.1} parent=11 // pred_check
          %p217 = pneg %p89
        $region18: #{tpu_custom_call.1} parent=11 // pred_check_branch
          %219 = sbr.rel (%p217) target = $region20
        $region19: #{tpu_custom_call.1} parent=11 // pred_region
          _
        $region20: #{tpu_custom_call.1} parent=11 // pred_fallthru
          _
        // Predicated region
        $region21: #{tpu_custom_call.1} parent=11 // pred_check
          %p220 = pneg %p110
        $region22: #{tpu_custom_call.1} parent=11 // pred_check_branch
          %222 = sbr.rel (%p220) target = $region24
        $region23: #{tpu_custom_call.1} parent=11 // pred_region
          _
        $region24: #{tpu_custom_call.1} parent=11 // pred_fallthru
          _
        // Predicated region
        $region25: #{tpu_custom_call.1} parent=11 // pred_check
          %p223 = pneg %p131
        $region26: #{tpu_custom_call.1} parent=11 // pred_check_branch
          %225 = sbr.rel (%p223) target = $region28
        $region27: #{tpu_custom_call.1} parent=11 // pred_region
          _
        $region28: #{tpu_custom_call.1} parent=11 // pred_fallthru
          _
        // Predicated region
        $region29: #{tpu_custom_call.1} parent=11 // pred_check
          %p226 = pneg %p152
        $region30: #{tpu_custom_call.1} parent=11 // pred_check_branch
          %228 = sbr.rel (%p226) target = $region32
        $region31: #{tpu_custom_call.1} parent=11 // pred_region
          _
        $region32: #{tpu_custom_call.1} parent=11 // pred_fallthru
          _
        // Predicated region
        $region33: #{tpu_custom_call.1} parent=11 // pred_check
          %p229 = pneg %p173
        $region34: #{tpu_custom_call.1} parent=11 // pred_check_branch
          %231 = sbr.rel (%p229) target = $region36
        $region35: #{tpu_custom_call.1} parent=11 // pred_region
          _
        $region36: #{tpu_custom_call.1} parent=11 // pred_fallthru
          _
      $region12: #{tpu_custom_call.1} parent=5 // pred_fallthru
        _
      %p232 = scmp.lt.s32.totalorder %s21, 2
      // Predicated region
      $region37: #{tpu_custom_call.1} parent=5 // pred_check
        %p233 = pneg %p232
      $region38: #{tpu_custom_call.1} parent=5 // pred_check_branch
        %235 = sbr.rel (%p233) target = $region40
      $region39: #{tpu_custom_call.1} parent=5 // pred_region
        // Predicated region
        $region41: #{tpu_custom_call.1} parent=39 // pred_check
          %p236 = pneg %p41
        $region42: #{tpu_custom_call.1} parent=39 // pred_check_branch
          %238 = sbr.rel (%p236) target = $region44
        $region43: #{tpu_custom_call.1} parent=39 // pred_region
          %s239 = sand.u32 %s31, 1
          %s240 = scalar_lea.sflag [#allocation4], %s239
          %s241 = sand.u32 %s31, 1
          %s242 = smul.addr %s241, 128
          %s243 = scalar_lea.vmem [#allocation3], %s242
          %s244 = smul.u32 4, %s21
          %s246 = ssub.s32 2048, 2048
          %247 = vsyncadd %s240, %s246
          %s248 = smul.addr %s244, 4
          %s249 = smul.addr %s248, 128
          %s250 = scalar_lea.hbm %s0, %s249
          %s251 = sshll.u32 %s243, 4
          %s252 = int_to_ptr.vmem [resolvable:$true] %s251
          %257 = dma.hbm_to_vmem [thread:$0]  %s250, 2048, %s252, %s240, 128, 128, 8
        $region44: #{tpu_custom_call.1} parent=39 // pred_fallthru
          _
      $region40: #{tpu_custom_call.1} parent=5 // pred_fallthru
        _
      %p258 = scmp.le.s32.totalorder 1, %s21
      %p259 = scmp.lt.s32.totalorder %s21, 3
      %p260 = pnand %p258, %p259
      %p261 = pneg %p260
      // Predicated region
      $region45: #{tpu_custom_call.1} parent=5 // pred_check
        _
      $region46: #{tpu_custom_call.1} parent=5 // pred_check_branch
        %263 = sbr.rel (%p260) target = $region48
      $region47: #{tpu_custom_call.1} parent=5 // pred_region
        %s264 = ssub.s32 %s21, 1
        %s265 = sand.u32 %s34, 1
        %s266 = scalar_lea.sflag [#allocation4], %s265
        %s267 = sand.u32 %s34, 1
        %s268 = smul.addr %s267, 128
        %s269 = scalar_lea.vmem [#allocation3], %s268
        // Predicated region
        $region49: #{tpu_custom_call.1} parent=47 // pred_check
          %p270 = pneg %p47
        $region50: #{tpu_custom_call.1} parent=47 // pred_check_branch
          %272 = sbr.rel (%p270) target = $region52
        $region51: #{tpu_custom_call.1} parent=47 // pred_region
          %273 = dma.done %s266, 2048
        $region52: #{tpu_custom_call.1} parent=47 // pred_fallthru
          _
        %s274 = sand.u32 %s34, 1
        %s275 = scalar_lea.sflag [#allocation4], %s274
        %s276 = sand.u32 %s34, 1
        %s277 = smul.addr %s276, 128
        %s278 = scalar_lea.vmem [#allocation3], %s277
        %p279 = pneg %p47
        %p280 = pneg %p44
        %p281 = pneg %p68
        %p282 = pneg %p65
        %p283 = pneg %p89
        %p284 = pneg %p86
        %p285 = pneg %p110
        %p286 = pneg %p107
        %p287 = pneg %p131
        %p288 = pneg %p128
        %p289 = pneg %p152
        %p290 = pneg %p149
        %p291 = pneg %p173
        %p292 = pneg %p170
        %p293 = pneg %p199
        %p294 = pneg %p196
        %s295 = sand.u32 %s186, 1
        %s296 = scalar_lea.sflag [#allocation5], %s295
        %s297 = sand.u32 %s186, 1
        %s298 = smul.addr %s297, 128
        %s299 = scalar_lea.vmem [#allocation6], %s298
        %s300 = smul.u32 4, %s26
        %s301 = smul.u32 4, %s26
        %v302 = vld [vmem:[%s269] sm:$0xff]
        %v303 = vld [vmem:[%s269 + $0x8] sm:$0xff]
        %v304 = vld [vmem:[%s269 + $0x10] sm:$0xff]
        %v305 = vld [vmem:[%s269 + $0x18] sm:$0xff]
        %v306 = vld [vmem:[%s269 + $0x20] sm:$0xff]
        %v307 = vld [vmem:[%s269 + $0x28] sm:$0xff]
        %v308 = vld [vmem:[%s269 + $0x30] sm:$0xff]
        %v309 = vld [vmem:[%s269 + $0x38] sm:$0xff]
        %v310 = vld [vmem:[%s269 + $0x40] sm:$0xff]
        %v311 = vld [vmem:[%s269 + $0x48] sm:$0xff]
        %v312 = vld [vmem:[%s269 + $0x50] sm:$0xff]
        %v313 = vld [vmem:[%s269 + $0x58] sm:$0xff]
        %v314 = vld [vmem:[%s269 + $0x60] sm:$0xff]
        %v315 = vld [vmem:[%s269 + $0x68] sm:$0xff]
        %v316 = vld [vmem:[%s269 + $0x70] sm:$0xff]
        %v317 = vld [vmem:[%s269 + $0x78] sm:$0xff]
        %318 = vadd.xlane.f32.xlu0 %v302
        %v319 = vpop.xlane.xlu0 %318
        %320 = vadd.xlane.f32.xlu0 %v303
        %v321 = vpop.xlane.xlu0 %320
        %322 = vadd.xlane.f32.xlu0 %v304
        %v323 = vpop.xlane.xlu0 %322
        %324 = vadd.xlane.f32.xlu0 %v305
        %v325 = vpop.xlane.xlu0 %324
        %326 = vadd.xlane.f32.xlu0 %v306
        %v327 = vpop.xlane.xlu0 %326
        %328 = vadd.xlane.f32.xlu0 %v307
        %v329 = vpop.xlane.xlu0 %328
        %330 = vadd.xlane.f32.xlu0 %v308
        %v331 = vpop.xlane.xlu0 %330
        %332 = vadd.xlane.f32.xlu0 %v309
        %v333 = vpop.xlane.xlu0 %332
        %334 = vadd.xlane.f32.xlu0 %v310
        %v335 = vpop.xlane.xlu0 %334
        %336 = vadd.xlane.f32.xlu0 %v311
        %v337 = vpop.xlane.xlu0 %336
        %338 = vadd.xlane.f32.xlu0 %v312
        %v339 = vpop.xlane.xlu0 %338
        %340 = vadd.xlane.f32.xlu0 %v313
        %v341 = vpop.xlane.xlu0 %340
        %342 = vadd.xlane.f32.xlu0 %v314
        %v343 = vpop.xlane.xlu0 %342
        %344 = vadd.xlane.f32.xlu0 %v315
        %v345 = vpop.xlane.xlu0 %344
        %346 = vadd.xlane.f32.xlu0 %v316
        %v347 = vpop.xlane.xlu0 %346
        %348 = vadd.xlane.f32.xlu0 %v317
        %v349 = vpop.xlane.xlu0 %348
        %v350 = vrcp.pop 128.0
        %v351 = vmul.f32 %v319, %v350
        %v352 = vmul.f32 %v321, %v350
        %v353 = vmul.f32 %v323, %v350
        %v354 = vmul.f32 %v325, %v350
        %v355 = vmul.f32 %v327, %v350
        %v356 = vmul.f32 %v329, %v350
        %v357 = vmul.f32 %v331, %v350
        %v358 = vmul.f32 %v333, %v350
        %v359 = vmul.f32 %v335, %v350
        %v360 = vmul.f32 %v337, %v350
        %v361 = vmul.f32 %v339, %v350
        %v362 = vmul.f32 %v341, %v350
        %v363 = vmul.f32 %v343, %v350
        %v364 = vmul.f32 %v345, %v350
        %v365 = vmul.f32 %v347, %v350
        %v366 = vmul.f32 %v349, %v350
        %v367 = vld [vmem:[%s1] sm:$0x3]
        %v384 = vlaneseq
        %v385 = vand.u32 %v384, 127
        %v386 = vlaneseq
        %v387 = vshrl.u32 %v386, 7
        %v388 = vsub.s32 %v385, %v387
        %v389 = vrot.slane %v351, %v388
        %v390 = vadd.s32 %v385, 4294967288
        %v391 = vlaneseq
        %v392 = vshrl.u32 %v391, 7
        %v393 = vsub.s32 %v390, %v392
        %v394 = vrot.slane %v352, %v393
        %vm395 = vcmask 130112
        %v396 = vsel %vm395, %v394, %v389
        %v397 = vadd.s32 %v385, 4294967280
        %v398 = vlaneseq
        %v399 = vshrl.u32 %v398, 7
        %v400 = vsub.s32 %v397, %v399
        %v401 = vrot.slane %v353, %v400
        %vm402 = vcmask 195712
        %v403 = vsel %vm402, %v401, %v396
        %v404 = vadd.s32 %v385, 4294967272
        %v405 = vlaneseq
        %v406 = vshrl.u32 %v405, 7
        %v407 = vsub.s32 %v404, %v406
        %v408 = vrot.slane %v354, %v407
        %vm409 = vcmask 261312
        %v410 = vsel %vm409, %v408, %v403
        %v411 = vlaneseq
        %v412 = vshrl.u32 %v411, 7
        %v413 = vsub.s32 %v385, %v412
        %v414 = vrot.slane %v355, %v413
        %v415 = vlaneseq
        %v416 = vshrl.u32 %v415, 7
        %v417 = vsub.s32 %v390, %v416
        %v418 = vrot.slane %v356, %v417
        %v419 = vsel %vm395, %v418, %v414
        %v420 = vlaneseq
        %v421 = vshrl.u32 %v420, 7
        %v422 = vsub.s32 %v397, %v421
        %v423 = vrot.slane %v357, %v422
        %v424 = vsel %vm402, %v423, %v419
        %v425 = vlaneseq
        %v426 = vshrl.u32 %v425, 7
        %v427 = vsub.s32 %v404, %v426
        %v428 = vrot.slane %v358, %v427
        %v429 = vsel %vm409, %v428, %v424
        %v430 = vlaneseq
        %v431 = vshrl.u32 %v430, 7
        %v432 = vsub.s32 %v385, %v431
        %v433 = vrot.slane %v359, %v432
        %v434 = vlaneseq
        %v435 = vshrl.u32 %v434, 7
        %v436 = vsub.s32 %v390, %v435
        %v437 = vrot.slane %v360, %v436
        %v438 = vsel %vm395, %v437, %v433
        %v439 = vlaneseq
        %v440 = vshrl.u32 %v439, 7
        %v441 = vsub.s32 %v397, %v440
        %v442 = vrot.slane %v361, %v441
        %v443 = vsel %vm402, %v442, %v438
        %v444 = vlaneseq
        %v445 = vshrl.u32 %v444, 7
        %v446 = vsub.s32 %v404, %v445
        %v447 = vrot.slane %v362, %v446
        %v448 = vsel %vm409, %v447, %v443
        %v449 = vlaneseq
        %v450 = vshrl.u32 %v449, 7
        %v451 = vsub.s32 %v385, %v450
        %v452 = vrot.slane %v363, %v451
        %v453 = vlaneseq
        %v454 = vshrl.u32 %v453, 7
        %v455 = vsub.s32 %v390, %v454
        %v456 = vrot.slane %v364, %v455
        %v457 = vsel %vm395, %v456, %v452
        %v458 = vlaneseq
        %v459 = vshrl.u32 %v458, 7
        %v460 = vsub.s32 %v397, %v459
        %v461 = vrot.slane %v365, %v460
        %v462 = vsel %vm402, %v461, %v457
        %v463 = vlaneseq
        %v464 = vshrl.u32 %v463, 7
        %v465 = vsub.s32 %v404, %v464
        %v466 = vrot.slane %v366, %v465
        %v467 = vsel %vm409, %v466, %v462
        %vm468 = vcmask 1041409
        %v473 = vmul.f32 %v367, %v410
        %v474 = vmul.f32 %v367, %v429
        %v475 = vmul.f32 %v367, %v448
        %v476 = vmul.f32 %v367, %v467
        %vm477 = vcmask 254976
        %v478 = vsel %vm477, %v473, 0.0
        %479 = vadd.xlane.f32.xlu0 %v478
        %v480 = vpop.xlane.xlu0 %479
        %v481 = vsel %vm477, %v474, 0.0
        %482 = vadd.xlane.f32.xlu0 %v481
        %v483 = vpop.xlane.xlu0 %482
        %v484 = vsel %vm477, %v475, 0.0
        %485 = vadd.xlane.f32.xlu0 %v484
        %v486 = vpop.xlane.xlu0 %485
        %v487 = vsel %vm477, %v476, 0.0
        %488 = vadd.xlane.f32.xlu0 %v487
        %v489 = vpop.xlane.xlu0 %488
        %v490 = vld [vmem:[%s2] sm:$0x1]
        %v492 = vlaneseq
        %v493 = vshrl.u32 %v492, 7
        %v494 = vsub.s32 0, %v493
        %v495 = vrot.slane %v490, %v494
        %497 = vbcast.lane.b32.xlu0 %v495, 256
        %v498 = vpop.permute.xlu0 %497
        %v500 = vadd.f32 %v480, %v498
        %v501 = vadd.f32 %v483, %v498
        %v502 = vadd.f32 %v486, %v498
        %v503 = vadd.f32 %v489, %v498
        %v504 = vmax.f32 %v500, 0.0
        %v505 = vmax.f32 %v501, 0.0
        %v506 = vmax.f32 %v502, 0.0
        %v507 = vmax.f32 %v503, 0.0
        %v508 = vld [vmem:[%s3] sm:$0xff]
        %v509 = vld [vmem:[%s3 + $0x8] sm:$0xff]
        %v510 = vld [vmem:[%s3 + $0x10] sm:$0xff]
        %v511 = vld [vmem:[%s3 + $0x18] sm:$0xff]
        %516 = vset.pattern.permute.xlu0 0
        %517 = vperm.xlu0 %516, %v504
        %v518 = vpop.permute.xlu0 %517
        %519 = vset.pattern.permute.xlu0 0
        %520 = vperm.xlu0 %519, %v505
        %v521 = vpop.permute.xlu0 %520
        %522 = vset.pattern.permute.xlu0 0
        %523 = vperm.xlu0 %522, %v506
        %v524 = vpop.permute.xlu0 %523
        %525 = vset.pattern.permute.xlu0 0
        %526 = vperm.xlu0 %525, %v507
        %v527 = vpop.permute.xlu0 %526
        %v528 = vlaneseq
        %v529 = vshrl.u32 %v528, 7
        %v530 = vsub.s32 %v385, %v529
        %v531 = vrot.slane %v518, %v530
        %v532 = vlaneseq
        %v533 = vshrl.u32 %v532, 7
        %v534 = vsub.s32 %v385, %v533
        %v535 = vrot.slane %v521, %v534
        %v536 = vlaneseq
        %v537 = vshrl.u32 %v536, 7
        %v538 = vsub.s32 %v385, %v537
        %v539 = vrot.slane %v524, %v538
        %v540 = vlaneseq
        %v541 = vshrl.u32 %v540, 7
        %v542 = vsub.s32 %v385, %v541
        %v543 = vrot.slane %v527, %v542
        %vm544 = vcmask 1042434
        %v545 = vsel %vm544, %v531, %v531
        %vm546 = vcmask 1043459
        %v547 = vsel %vm546, %v531, %v545
        %vm548 = vcmask 1044484
        %v549 = vsel %vm548, %v531, %v547
        %vm550 = vcmask 1045509
        %v551 = vsel %vm550, %v531, %v549
        %vm552 = vcmask 1046534
        %v553 = vsel %vm552, %v531, %v551
        %vm554 = vcmask 1047559
        %v555 = vsel %vm554, %v531, %v553
        %v556 = vsel %vm544, %v535, %v535
        %v557 = vsel %vm546, %v535, %v556
        %v558 = vsel %vm548, %v535, %v557
        %v559 = vsel %vm550, %v535, %v558
        %v560 = vsel %vm552, %v535, %v559
        %v561 = vsel %vm554, %v535, %v560
        %v562 = vsel %vm544, %v539, %v539
        %v563 = vsel %vm546, %v539, %v562
        %v564 = vsel %vm548, %v539, %v563
        %v565 = vsel %vm550, %v539, %v564
        %v566 = vsel %vm552, %v539, %v565
        %v567 = vsel %vm554, %v539, %v566
        %v568 = vsel %vm544, %v543, %v543
        %v569 = vsel %vm546, %v543, %v568
        %v570 = vsel %vm548, %v543, %v569
        %v571 = vsel %vm550, %v543, %v570
        %v572 = vsel %vm552, %v543, %v571
        %v573 = vsel %vm554, %v543, %v572
        %v578 = vmul.f32 %v508, %v555
        %v579 = vmul.f32 %v509, %v555
        %v580 = vmul.f32 %v510, %v555
        %v581 = vmul.f32 %v511, %v555
        %v582 = vmul.f32 %v508, %v561
        %v583 = vmul.f32 %v509, %v561
        %v584 = vmul.f32 %v510, %v561
        %v585 = vmul.f32 %v511, %v561
        %v586 = vmul.f32 %v508, %v567
        %v587 = vmul.f32 %v509, %v567
        %v588 = vmul.f32 %v510, %v567
        %v589 = vmul.f32 %v511, %v567
        %v590 = vmul.f32 %v508, %v573
        %v591 = vmul.f32 %v509, %v573
        %v592 = vmul.f32 %v510, %v573
        %v593 = vmul.f32 %v511, %v573
        %vm594 = vcmask 15360
        %v595 = vsel %vm594, %v578, 0.0
        %596 = vadd.xlane.f32.xlu0 %v595
        %v597 = vpop.xlane.xlu0 %596
        %v598 = vsel %vm594, %v579, 0.0
        %599 = vadd.xlane.f32.xlu0 %v598
        %v600 = vpop.xlane.xlu0 %599
        %v601 = vsel %vm594, %v580, 0.0
        %602 = vadd.xlane.f32.xlu0 %v601
        %v603 = vpop.xlane.xlu0 %602
        %v604 = vsel %vm594, %v581, 0.0
        %605 = vadd.xlane.f32.xlu0 %v604
        %v606 = vpop.xlane.xlu0 %605
        %v607 = vsel %vm594, %v582, 0.0
        %608 = vadd.xlane.f32.xlu0 %v607
        %v609 = vpop.xlane.xlu0 %608
        %v610 = vsel %vm594, %v583, 0.0
        %611 = vadd.xlane.f32.xlu0 %v610
        %v612 = vpop.xlane.xlu0 %611
        %v613 = vsel %vm594, %v584, 0.0
        %614 = vadd.xlane.f32.xlu0 %v613
        %v615 = vpop.xlane.xlu0 %614
        %v616 = vsel %vm594, %v585, 0.0
        %617 = vadd.xlane.f32.xlu0 %v616
        %v618 = vpop.xlane.xlu0 %617
        %v619 = vsel %vm594, %v586, 0.0
        %620 = vadd.xlane.f32.xlu0 %v619
        %v621 = vpop.xlane.xlu0 %620
        %v622 = vsel %vm594, %v587, 0.0
        %623 = vadd.xlane.f32.xlu0 %v622
        %v624 = vpop.xlane.xlu0 %623
        %v625 = vsel %vm594, %v588, 0.0
        %626 = vadd.xlane.f32.xlu0 %v625
        %v627 = vpop.xlane.xlu0 %626
        %v628 = vsel %vm594, %v589, 0.0
        %629 = vadd.xlane.f32.xlu0 %v628
        %v630 = vpop.xlane.xlu0 %629
        %v631 = vsel %vm594, %v590, 0.0
        %632 = vadd.xlane.f32.xlu0 %v631
        %v633 = vpop.xlane.xlu0 %632
        %v634 = vsel %vm594, %v591, 0.0
        %635 = vadd.xlane.f32.xlu0 %v634
        %v636 = vpop.xlane.xlu0 %635
        %v637 = vsel %vm594, %v592, 0.0
        %638 = vadd.xlane.f32.xlu0 %v637
        %v639 = vpop.xlane.xlu0 %638
        %v640 = vsel %vm594, %v593, 0.0
        %641 = vadd.xlane.f32.xlu0 %v640
        %v642 = vpop.xlane.xlu0 %641
        %v643 = vld [vmem:[%s4] sm:$0x1]
        %v645 = vlaneseq
        %v646 = vshrl.u32 %v645, 7
        %v647 = vsub.s32 0, %v646
        %v648 = vrot.slane %v643, %v647
        %650 = vbcast.lane.b32.xlu0 %v648, 256
        %v651 = vpop.permute.xlu0 %650
        %s653 = sor.u32 256, 8
        %654 = vbcast.lane.b32.xlu0 %v648, %s653
        %v655 = vpop.permute.xlu0 %654
        %s657 = sor.u32 256, 16
        %658 = vbcast.lane.b32.xlu0 %v648, %s657
        %v659 = vpop.permute.xlu0 %658
        %s661 = sor.u32 256, 24
        %662 = vbcast.lane.b32.xlu0 %v648, %s661
        %v663 = vpop.permute.xlu0 %662
        %v668 = vadd.f32 %v597, %v651
        %v669 = vadd.f32 %v600, %v655
        %v670 = vadd.f32 %v603, %v659
        %v671 = vadd.f32 %v606, %v663
        %v672 = vadd.f32 %v609, %v651
        %v673 = vadd.f32 %v612, %v655
        %v674 = vadd.f32 %v615, %v659
        %v675 = vadd.f32 %v618, %v663
        %v676 = vadd.f32 %v621, %v651
        %v677 = vadd.f32 %v624, %v655
        %v678 = vadd.f32 %v627, %v659
        %v679 = vadd.f32 %v630, %v663
        %v680 = vadd.f32 %v633, %v651
        %v681 = vadd.f32 %v636, %v655
        %v682 = vadd.f32 %v639, %v659
        %v683 = vadd.f32 %v642, %v663
        %v684 = vxor.u32 %v668, 2147483648
        %v685 = vxor.u32 %v669, 2147483648
        %v686 = vxor.u32 %v670, 2147483648
        %v687 = vxor.u32 %v671, 2147483648
        %v688 = vxor.u32 %v672, 2147483648
        %v689 = vxor.u32 %v673, 2147483648
        %v690 = vxor.u32 %v674, 2147483648
        %v691 = vxor.u32 %v675, 2147483648
        %v692 = vxor.u32 %v676, 2147483648
        %v693 = vxor.u32 %v677, 2147483648
        %v694 = vxor.u32 %v678, 2147483648
        %v695 = vxor.u32 %v679, 2147483648
        %v696 = vxor.u32 %v680, 2147483648
        %v697 = vxor.u32 %v681, 2147483648
        %v698 = vxor.u32 %v682, 2147483648
        %v699 = vxor.u32 %v683, 2147483648
        %v700 = vmul.f32 %v684, 1.442695
        %v701 = vpow.pop %v700
        %v702 = vmul.f32 %v685, 1.442695
        %v703 = vpow.pop %v702
        %v704 = vmul.f32 %v686, 1.442695
        %v705 = vpow.pop %v704
        %v706 = vmul.f32 %v687, 1.442695
        %v707 = vpow.pop %v706
        %v708 = vmul.f32 %v688, 1.442695
        %v709 = vpow.pop %v708
        %v710 = vmul.f32 %v689, 1.442695
        %v711 = vpow.pop %v710
        %v712 = vmul.f32 %v690, 1.442695
        %v713 = vpow.pop %v712
        %v714 = vmul.f32 %v691, 1.442695
        %v715 = vpow.pop %v714
        %v716 = vmul.f32 %v692, 1.442695
        %v717 = vpow.pop %v716
        %v718 = vmul.f32 %v693, 1.442695
        %v719 = vpow.pop %v718
        %v720 = vmul.f32 %v694, 1.442695
        %v721 = vpow.pop %v720
        %v722 = vmul.f32 %v695, 1.442695
        %v723 = vpow.pop %v722
        %v724 = vmul.f32 %v696, 1.442695
        %v725 = vpow.pop %v724
        %v726 = vmul.f32 %v697, 1.442695
        %v727 = vpow.pop %v726
        %v728 = vmul.f32 %v698, 1.442695
        %v729 = vpow.pop %v728
        %v730 = vmul.f32 %v699, 1.442695
        %v731 = vpow.pop %v730
        %v732 = vadd.f32 %v701, 1.0
        %v733 = vadd.f32 %v703, 1.0
        %v734 = vadd.f32 %v705, 1.0
        %v735 = vadd.f32 %v707, 1.0
        %v736 = vadd.f32 %v709, 1.0
        %v737 = vadd.f32 %v711, 1.0
        %v738 = vadd.f32 %v713, 1.0
        %v739 = vadd.f32 %v715, 1.0
        %v740 = vadd.f32 %v717, 1.0
        %v741 = vadd.f32 %v719, 1.0
        %v742 = vadd.f32 %v721, 1.0
        %v743 = vadd.f32 %v723, 1.0
        %v744 = vadd.f32 %v725, 1.0
        %v745 = vadd.f32 %v727, 1.0
        %v746 = vadd.f32 %v729, 1.0
        %v747 = vadd.f32 %v731, 1.0
        %v748 = vrcp.pop %v732
        %v749 = vmul.f32 1.0, %v748
        %v750 = vrcp.pop %v733
        %v751 = vmul.f32 1.0, %v750
        %v752 = vrcp.pop %v734
        %v753 = vmul.f32 1.0, %v752
        %v754 = vrcp.pop %v735
        %v755 = vmul.f32 1.0, %v754
        %v756 = vrcp.pop %v736
        %v757 = vmul.f32 1.0, %v756
        %v758 = vrcp.pop %v737
        %v759 = vmul.f32 1.0, %v758
        %v760 = vrcp.pop %v738
        %v761 = vmul.f32 1.0, %v760
        %v762 = vrcp.pop %v739
        %v763 = vmul.f32 1.0, %v762
        %v764 = vrcp.pop %v740
        %v765 = vmul.f32 1.0, %v764
        %v766 = vrcp.pop %v741
        %v767 = vmul.f32 1.0, %v766
        %v768 = vrcp.pop %v742
        %v769 = vmul.f32 1.0, %v768
        %v770 = vrcp.pop %v743
        %v771 = vmul.f32 1.0, %v770
        %v772 = vrcp.pop %v744
        %v773 = vmul.f32 1.0, %v772
        %v774 = vrcp.pop %v745
        %v775 = vmul.f32 1.0, %v774
        %v776 = vrcp.pop %v746
        %v777 = vmul.f32 1.0, %v776
        %v778 = vrcp.pop %v747
        %v779 = vmul.f32 1.0, %v778
        %v780 = vld [vmem:[%s5] sm:$0xff]
        %vm781 = vcmask 261120
        %v783 = vsel %vm781, %v780, 0
        %785 = vmatprep.subr.mxu0 0.0
        %786 = vmatpush1.msra.mxu0 %v302
        %787 = vmatprep.subr.mxu0 0.0
        %788 = vmatpush1.msra.mxu0 %v303
        %789 = vmatprep.subr.mxu0 0.0
        %790 = vmatpush1.msra.mxu0 %v304
        %791 = vmatprep.subr.mxu0 0.0
        %792 = vmatpush1.msra.mxu0 %v305
        %793 = vmatprep.subr.mxu0 0.0
        %794 = vmatpush1.msra.mxu0 0.0
        %795 = vmatprep.subr.mxu0 0.0
        %796 = vmatpush1.msra.mxu0 0.0
        %797 = vmatprep.subr.mxu0 0.0
        %798 = vmatpush1.msra.mxu0 0.0
        %799 = vmatprep.subr.mxu0 0.0
        %800 = vmatpush1.msra.mxu0 0.0
        %801 = vmatprep.subr.mxu0 0.0
        %802 = vmatpush1.msra.mxu0 0.0
        %803 = vmatprep.subr.mxu0 0.0
        %804 = vmatpush1.msra.mxu0 0.0
        %805 = vmatprep.subr.mxu0 0.0
        %806 = vmatpush1.msra.mxu0 0.0
        %807 = vmatprep.subr.mxu0 0.0
        %808 = vmatpush1.msra.mxu0 0.0
        %809 = vmatprep.subr.mxu0 0.0
        %810 = vmatpush1.msra.mxu0 0.0
        %811 = vmatprep.subr.mxu0 0.0
        %812 = vmatpush1.msra.mxu0 0.0
        %813 = vmatprep.subr.mxu0 0.0
        %814 = vmatpush1.msra.mxu0 0.0
        %815 = vmatprep.subr.mxu0 0.0
        %816 = vmatpush1.msra.mxu0 0.0
        %817 = vmatprep.subr.mxu0 0.0
        %818 = vmatpush1.msra.mxu0 0.0
        %819 = vmatprep.subr.mxu0 0.0
        %820 = vmatpush1.msra.mxu0 0.0
        %821 = vmatprep.subr.mxu0 0.0
        %822 = vmatpush1.msra.mxu0 0.0
        %823 = vmatprep.subr.mxu0 0.0
        %824 = vmatpush1.msra.mxu0 0.0
        %825 = vmatprep.subr.mxu0 0.0
        %826 = vmatpush1.msra.mxu0 0.0
        %827 = vmatprep.subr.mxu0 0.0
        %828 = vmatpush1.msra.mxu0 0.0
        %829 = vmatprep.subr.mxu0 0.0
        %830 = vmatpush1.msra.mxu0 0.0
        %831 = vmatprep.subr.mxu0 0.0
        %832 = vmatpush1.msra.mxu0 0.0
        %833 = vmatprep.subr.mxu0 0.0
        %834 = vmatpush1.msra.mxu0 0.0
        %835 = vmatprep.subr.mxu0 0.0
        %836 = vmatpush1.msra.mxu0 0.0
        %837 = vmatprep.subr.mxu0 0.0
        %838 = vmatpush1.msra.mxu0 0.0
        %839 = vmatprep.subr.mxu0 0.0
        %840 = vmatpush1.msra.mxu0 0.0
        %841 = vmatprep.subr.mxu0 0.0
        %842 = vmatpush1.msra.mxu0 0.0
        %843 = vmatprep.subr.mxu0 0.0
        %844 = vmatpush1.msra.mxu0 0.0
        %845 = vmatprep.subr.mxu0 0.0
        %846 = vmatpush1.msra.mxu0 0.0
        %847 = vmatprep.subr.mxu0 0.0
        %848 = vmatpush1.msra.mxu0 0.0
        %849 = vmatprep.mubr.f32.mxu0 0.0
        %850 = vmatmul.mubr.f32.gmra.mrb[0].mxu0 %v783
        %v851 = vpop.f32.mrb[0].mxu0
        %v852 = vadd.f32 0.0, %v851
        %v853 = vpop.f32.mrb[0].mxu0
        %854 = vdwg.mxu0
        %855 = vmatprep.subr.mxu0 0.0
        %856 = vmatpush1.msra.mxu0 %v306
        %857 = vmatprep.subr.mxu0 0.0
        %858 = vmatpush1.msra.mxu0 %v307
        %859 = vmatprep.subr.mxu0 0.0
        %860 = vmatpush1.msra.mxu0 %v308
        %861 = vmatprep.subr.mxu0 0.0
        %862 = vmatpush1.msra.mxu0 %v309
        %863 = vmatprep.subr.mxu0 0.0
        %864 = vmatpush1.msra.mxu0 0.0
        %865 = vmatprep.subr.mxu0 0.0
        %866 = vmatpush1.msra.mxu0 0.0
        %867 = vmatprep.subr.mxu0 0.0
        %868 = vmatpush1.msra.mxu0 0.0
        %869 = vmatprep.subr.mxu0 0.0
        %870 = vmatpush1.msra.mxu0 0.0
        %871 = vmatprep.subr.mxu0 0.0
        %872 = vmatpush1.msra.mxu0 0.0
        %873 = vmatprep.subr.mxu0 0.0
        %874 = vmatpush1.msra.mxu0 0.0
        %875 = vmatprep.subr.mxu0 0.0
        %876 = vmatpush1.msra.mxu0 0.0
        %877 = vmatprep.subr.mxu0 0.0
        %878 = vmatpush1.msra.mxu0 0.0
        %879 = vmatprep.subr.mxu0 0.0
        %880 = vmatpush1.msra.mxu0 0.0
        %881 = vmatprep.subr.mxu0 0.0
        %882 = vmatpush1.msra.mxu0 0.0
        %883 = vmatprep.subr.mxu0 0.0
        %884 = vmatpush1.msra.mxu0 0.0
        %885 = vmatprep.subr.mxu0 0.0
        %886 = vmatpush1.msra.mxu0 0.0
        %887 = vmatprep.subr.mxu0 0.0
        %888 = vmatpush1.msra.mxu0 0.0
        %889 = vmatprep.subr.mxu0 0.0
        %890 = vmatpush1.msra.mxu0 0.0
        %891 = vmatprep.subr.mxu0 0.0
        %892 = vmatpush1.msra.mxu0 0.0
        %893 = vmatprep.subr.mxu0 0.0
        %894 = vmatpush1.msra.mxu0 0.0
        %895 = vmatprep.subr.mxu0 0.0
        %896 = vmatpush1.msra.mxu0 0.0
        %897 = vmatprep.subr.mxu0 0.0
        %898 = vmatpush1.msra.mxu0 0.0
        %899 = vmatprep.subr.mxu0 0.0
        %900 = vmatpush1.msra.mxu0 0.0
        %901 = vmatprep.subr.mxu0 0.0
        %902 = vmatpush1.msra.mxu0 0.0
        %903 = vmatprep.subr.mxu0 0.0
        %904 = vmatpush1.msra.mxu0 0.0
        %905 = vmatprep.subr.mxu0 0.0
        %906 = vmatpush1.msra.mxu0 0.0
        %907 = vmatprep.subr.mxu0 0.0
        %908 = vmatpush1.msra.mxu0 0.0
        %909 = vmatprep.subr.mxu0 0.0
        %910 = vmatpush1.msra.mxu0 0.0
        %911 = vmatprep.subr.mxu0 0.0
        %912 = vmatpush1.msra.mxu0 0.0
        %913 = vmatprep.subr.mxu0 0.0
        %914 = vmatpush1.msra.mxu0 0.0
        %915 = vmatprep.subr.mxu0 0.0
        %916 = vmatpush1.msra.mxu0 0.0
        %917 = vmatprep.subr.mxu0 0.0
        %918 = vmatpush1.msra.mxu0 0.0
        %919 = vmatprep.mubr.f32.mxu0 0.0
        %920 = vmatmul.mubr.f32.gmra.mrb[0].mxu0 %v783
        %v921 = vpop.f32.mrb[0].mxu0
        %v922 = vadd.f32 0.0, %v921
        %v923 = vpop.f32.mrb[0].mxu0
        %924 = vdwg.mxu0
        %925 = vmatprep.subr.mxu0 0.0
        %926 = vmatpush1.msra.mxu0 %v310
        %927 = vmatprep.subr.mxu0 0.0
        %928 = vmatpush1.msra.mxu0 %v311
        %929 = vmatprep.subr.mxu0 0.0
        %930 = vmatpush1.msra.mxu0 %v312
        %931 = vmatprep.subr.mxu0 0.0
        %932 = vmatpush1.msra.mxu0 %v313
        %933 = vmatprep.subr.mxu0 0.0
        %934 = vmatpush1.msra.mxu0 0.0
        %935 = vmatprep.subr.mxu0 0.0
        %936 = vmatpush1.msra.mxu0 0.0
        %937 = vmatprep.subr.mxu0 0.0
        %938 = vmatpush1.msra.mxu0 0.0
        %939 = vmatprep.subr.mxu0 0.0
        %940 = vmatpush1.msra.mxu0 0.0
        %941 = vmatprep.subr.mxu0 0.0
        %942 = vmatpush1.msra.mxu0 0.0
        %943 = vmatprep.subr.mxu0 0.0
        %944 = vmatpush1.msra.mxu0 0.0
        %945 = vmatprep.subr.mxu0 0.0
        %946 = vmatpush1.msra.mxu0 0.0
        %947 = vmatprep.subr.mxu0 0.0
        %948 = vmatpush1.msra.mxu0 0.0
        %949 = vmatprep.subr.mxu0 0.0
        %950 = vmatpush1.msra.mxu0 0.0
        %951 = vmatprep.subr.mxu0 0.0
        %952 = vmatpush1.msra.mxu0 0.0
        %953 = vmatprep.subr.mxu0 0.0
        %954 = vmatpush1.msra.mxu0 0.0
        %955 = vmatprep.subr.mxu0 0.0
        %956 = vmatpush1.msra.mxu0 0.0
        %957 = vmatprep.subr.mxu0 0.0
        %958 = vmatpush1.msra.mxu0 0.0
        %959 = vmatprep.subr.mxu0 0.0
        %960 = vmatpush1.msra.mxu0 0.0
        %961 = vmatprep.subr.mxu0 0.0
        %962 = vmatpush1.msra.mxu0 0.0
        %963 = vmatprep.subr.mxu0 0.0
        %964 = vmatpush1.msra.mxu0 0.0
        %965 = vmatprep.subr.mxu0 0.0
        %966 = vmatpush1.msra.mxu0 0.0
        %967 = vmatprep.subr.mxu0 0.0
        %968 = vmatpush1.msra.mxu0 0.0
        %969 = vmatprep.subr.mxu0 0.0
        %970 = vmatpush1.msra.mxu0 0.0
        %971 = vmatprep.subr.mxu0 0.0
        %972 = vmatpush1.msra.mxu0 0.0
        %973 = vmatprep.subr.mxu0 0.0
        %974 = vmatpush1.msra.mxu0 0.0
        %975 = vmatprep.subr.mxu0 0.0
        %976 = vmatpush1.msra.mxu0 0.0
        %977 = vmatprep.subr.mxu0 0.0
        %978 = vmatpush1.msra.mxu0 0.0
        %979 = vmatprep.subr.mxu0 0.0
        %980 = vmatpush1.msra.mxu0 0.0
        %981 = vmatprep.subr.mxu0 0.0
        %982 = vmatpush1.msra.mxu0 0.0
        %983 = vmatprep.subr.mxu0 0.0
        %984 = vmatpush1.msra.mxu0 0.0
        %985 = vmatprep.subr.mxu0 0.0
        %986 = vmatpush1.msra.mxu0 0.0
        %987 = vmatprep.subr.mxu0 0.0
        %988 = vmatpush1.msra.mxu0 0.0
        %989 = vmatprep.mubr.f32.mxu0 0.0
        %990 = vmatmul.mubr.f32.gmra.mrb[0].mxu0 %v783
        %v991 = vpop.f32.mrb[0].mxu0
        %v992 = vadd.f32 0.0, %v991
        %v993 = vpop.f32.mrb[0].mxu0
        %994 = vdwg.mxu0
        %995 = vmatprep.subr.mxu0 0.0
        %996 = vmatpush1.msra.mxu0 %v314
        %997 = vmatprep.subr.mxu0 0.0
        %998 = vmatpush1.msra.mxu0 %v315
        %999 = vmatprep.subr.mxu0 0.0
        %1000 = vmatpush1.msra.mxu0 %v316
        %1001 = vmatprep.subr.mxu0 0.0
        %1002 = vmatpush1.msra.mxu0 %v317
        %1003 = vmatprep.subr.mxu0 0.0
        %1004 = vmatpush1.msra.mxu0 0.0
        %1005 = vmatprep.subr.mxu0 0.0
        %1006 = vmatpush1.msra.mxu0 0.0
        %1007 = vmatprep.subr.mxu0 0.0
        %1008 = vmatpush1.msra.mxu0 0.0
        %1009 = vmatprep.subr.mxu0 0.0
        %1010 = vmatpush1.msra.mxu0 0.0
        %1011 = vmatprep.subr.mxu0 0.0
        %1012 = vmatpush1.msra.mxu0 0.0
        %1013 = vmatprep.subr.mxu0 0.0
        %1014 = vmatpush1.msra.mxu0 0.0
        %1015 = vmatprep.subr.mxu0 0.0
        %1016 = vmatpush1.msra.mxu0 0.0
        %1017 = vmatprep.subr.mxu0 0.0
        %1018 = vmatpush1.msra.mxu0 0.0
        %1019 = vmatprep.subr.mxu0 0.0
        %1020 = vmatpush1.msra.mxu0 0.0
        %1021 = vmatprep.subr.mxu0 0.0
        %1022 = vmatpush1.msra.mxu0 0.0
        %1023 = vmatprep.subr.mxu0 0.0
        %1024 = vmatpush1.msra.mxu0 0.0
        %1025 = vmatprep.subr.mxu0 0.0
        %1026 = vmatpush1.msra.mxu0 0.0
        %1027 = vmatprep.subr.mxu0 0.0
        %1028 = vmatpush1.msra.mxu0 0.0
        %1029 = vmatprep.subr.mxu0 0.0
        %1030 = vmatpush1.msra.mxu0 0.0
        %1031 = vmatprep.subr.mxu0 0.0
        %1032 = vmatpush1.msra.mxu0 0.0
        %1033 = vmatprep.subr.mxu0 0.0
        %1034 = vmatpush1.msra.mxu0 0.0
        %1035 = vmatprep.subr.mxu0 0.0
        %1036 = vmatpush1.msra.mxu0 0.0
        %1037 = vmatprep.subr.mxu0 0.0
        %1038 = vmatpush1.msra.mxu0 0.0
        %1039 = vmatprep.subr.mxu0 0.0
        %1040 = vmatpush1.msra.mxu0 0.0
        %1041 = vmatprep.subr.mxu0 0.0
        %1042 = vmatpush1.msra.mxu0 0.0
        %1043 = vmatprep.subr.mxu0 0.0
        %1044 = vmatpush1.msra.mxu0 0.0
        %1045 = vmatprep.subr.mxu0 0.0
        %1046 = vmatpush1.msra.mxu0 0.0
        %1047 = vmatprep.subr.mxu0 0.0
        %1048 = vmatpush1.msra.mxu0 0.0
        %1049 = vmatprep.subr.mxu0 0.0
        %1050 = vmatpush1.msra.mxu0 0.0
        %1051 = vmatprep.subr.mxu0 0.0
        %1052 = vmatpush1.msra.mxu0 0.0
        %1053 = vmatprep.subr.mxu0 0.0
        %1054 = vmatpush1.msra.mxu0 0.0
        %1055 = vmatprep.subr.mxu0 0.0
        %1056 = vmatpush1.msra.mxu0 0.0
        %1057 = vmatprep.subr.mxu0 0.0
        %1058 = vmatpush1.msra.mxu0 0.0
        %1059 = vmatprep.mubr.f32.mxu0 0.0
        %1060 = vmatmul.mubr.f32.gmra.mrb[0].mxu0 %v783
        %v1061 = vpop.f32.mrb[0].mxu0
        %v1062 = vadd.f32 0.0, %v1061
        %v1063 = vpop.f32.mrb[0].mxu0
        %1064 = vdwg.mxu0
        %v1069 = vrot.slane %v922, 7
        %v1070 = vsel %vm468, %v1069, %v852
        %v1071 = vrot.slane %v992, 6
        %v1072 = vsel %vm544, %v1071, %v1070
        %v1073 = vrot.slane %v1062, 5
        %v1074 = vsel %vm546, %v1073, %v1072
        %1076 = vrot.lane.b32.xlu0 %v1074, 3
        %v1077 = vpop.permute.xlu0 %1076
        %v1078 = vadd.s32 %v385, 4294967293
        %vm1079 = vcmp.ge.s32.totalorder %v1078, 0
        %vm1080 = vcmp.lt.s32.totalorder %v1078, 128
        %vm1081 = vmand %vm1079, %vm1080
        %v1082 = vsel %vm1081, 1, 0
        %vm1083 = vcmp.eq.s32.totalorder %v1082, 1
        %v1084 = vsel %vm1083, %v1077, 0.0
        %v1085 = vadd.f32 %v1084, 0.0
        %v1086 = vrot.slane %v852, 1
        %v1087 = vsel %vm468, %v922, %v1086
        %v1088 = vrot.slane %v992, 7
        %v1089 = vsel %vm544, %v1088, %v1087
        %v1090 = vrot.slane %v1062, 6
        %v1091 = vsel %vm546, %v1090, %v1089
        %1093 = vrot.lane.b32.xlu0 %v1091, 2
        %v1094 = vpop.permute.xlu0 %1093
        %v1095 = vadd.s32 %v385, 4294967294
        %vm1096 = vcmp.ge.s32.totalorder %v1095, 0
        %vm1097 = vcmp.lt.s32.totalorder %v1095, 128
        %vm1098 = vmand %vm1096, %vm1097
        %v1099 = vsel %vm1098, 1, 0
        %vm1100 = vcmp.eq.s32.totalorder %v1099, 1
        %v1101 = vsel %vm1100, %v1094, 0.0
        %v1102 = vadd.f32 %v1085, %v1101
        %v1103 = vrot.slane %v852, 2
        %v1104 = vrot.slane %v922, 1
        %v1105 = vsel %vm468, %v1104, %v1103
        %v1106 = vsel %vm544, %v992, %v1105
        %v1107 = vrot.slane %v1062, 7
        %v1108 = vsel %vm546, %v1107, %v1106
        %1110 = vrot.lane.b32.xlu0 %v1108, 1
        %v1111 = vpop.permute.xlu0 %1110
        %v1112 = vadd.s32 %v385, 4294967295
        %vm1113 = vcmp.ge.s32.totalorder %v1112, 0
        %vm1114 = vcmp.lt.s32.totalorder %v1112, 128
        %vm1115 = vmand %vm1113, %vm1114
        %v1116 = vsel %vm1115, 1, 0
        %vm1117 = vcmp.eq.s32.totalorder %v1116, 1
        %v1118 = vsel %vm1117, %v1111, 0.0
        %v1119 = vadd.f32 %v1102, %v1118
        %vm1120 = vcmp.ge.s32.totalorder %v385, 0
        %vm1121 = vcmp.lt.s32.totalorder %v385, 128
        %vm1122 = vmand %vm1120, %vm1121
        %v1123 = vsel %vm1122, 1, 0
        %vm1124 = vcmp.eq.s32.totalorder %v1123, 1
        %v1125 = vrot.slane %v852, 3
        %v1126 = vrot.slane %v922, 2
        %v1127 = vsel %vm468, %v1126, %v1125
        %v1128 = vrot.slane %v992, 1
        %v1129 = vsel %vm544, %v1128, %v1127
        %v1130 = vsel %vm546, %v1062, %v1129
        %v1132 = vsel %vm1124, %v1130, 0.0
        %v1133 = vadd.f32 %v1119, %v1132
        %v1134 = vrot.slane %v852, 4
        %v1135 = vrot.slane %v922, 3
        %v1136 = vsel %vm468, %v1135, %v1134
        %v1137 = vrot.slane %v992, 2
        %v1138 = vsel %vm544, %v1137, %v1136
        %v1139 = vrot.slane %v1062, 1
        %v1140 = vsel %vm546, %v1139, %v1138
        %1142 = vrot.lane.b32.xlu0 %v1140, 127
        %v1143 = vpop.permute.xlu0 %1142
        %v1144 = vadd.s32 %v385, 1
        %vm1145 = vcmp.ge.s32.totalorder %v1144, 0
        %vm1146 = vcmp.lt.s32.totalorder %v1144, 128
        %vm1147 = vmand %vm1145, %vm1146
        %v1148 = vsel %vm1147, 1, 0
        %vm1149 = vcmp.eq.s32.totalorder %v1148, 1
        %v1150 = vsel %vm1149, %v1143, 0.0
        %v1151 = vadd.f32 %v1133, %v1150
        %v1152 = vrot.slane %v852, 5
        %v1153 = vrot.slane %v922, 4
        %v1154 = vsel %vm468, %v1153, %v1152
        %v1155 = vrot.slane %v992, 3
        %v1156 = vsel %vm544, %v1155, %v1154
        %v1157 = vrot.slane %v1062, 2
        %v1158 = vsel %vm546, %v1157, %v1156
        %1160 = vrot.lane.b32.xlu0 %v1158, 126
        %v1161 = vpop.permute.xlu0 %1160
        %v1162 = vadd.s32 %v385, 2
        %vm1163 = vcmp.ge.s32.totalorder %v1162, 0
        %vm1164 = vcmp.lt.s32.totalorder %v1162, 128
        %vm1165 = vmand %vm1163, %vm1164
        %v1166 = vsel %vm1165, 1, 0
        %vm1167 = vcmp.eq.s32.totalorder %v1166, 1
        %v1168 = vsel %vm1167, %v1161, 0.0
        %v1169 = vadd.f32 %v1151, %v1168
        %v1170 = vrot.slane %v852, 6
        %v1171 = vrot.slane %v922, 5
        %v1172 = vsel %vm468, %v1171, %v1170
        %v1173 = vrot.slane %v992, 4
        %v1174 = vsel %vm544, %v1173, %v1172
        %v1175 = vrot.slane %v1062, 3
        %v1176 = vsel %vm546, %v1175, %v1174
        %1178 = vrot.lane.b32.xlu0 %v1176, 125
        %v1179 = vpop.permute.xlu0 %1178
        %v1180 = vadd.s32 %v385, 3
        %vm1181 = vcmp.ge.s32.totalorder %v1180, 0
        %vm1182 = vcmp.lt.s32.totalorder %v1180, 128
        %vm1183 = vmand %vm1181, %vm1182
        %v1184 = vsel %vm1183, 1, 0
        %vm1185 = vcmp.eq.s32.totalorder %v1184, 1
        %v1186 = vsel %vm1185, %v1179, 0.0
        %v1187 = vadd.f32 %v1169, %v1186
        %v1188 = vld [vmem:[#allocation2] sm:$0x1]
        %s1189 = vtos %v1188
        %v1190 = vstv %s1189
        %v1191 = vadd.f32 %v1187, %v1190
        %v1192 = vxor.u32 %v1191, 2147483648
        %v1193 = vmul.f32 %v1192, 1.442695
        %v1194 = vpow.pop %v1193
        %v1195 = vadd.f32 %v1194, 1.0
        %v1196 = vrcp.pop %v1195
        %v1197 = vmul.f32 1.0, %v1196
        %v1200 = vunpack.c.l.s4 1966171168
        %v1201 = vunpack.c.0.s8 %v1200
        %v1202 = vlaneseq
        %v1203 = vshrl.u32 %v1202, 7
        %v1204 = vsub.s32 %v1201, %v1203
        %v1205 = vrot.slane %v1197, %v1204
        %v1206 = vcombine.high %v1205, %v1205
        %v1208 = vunpack.c.l.s4 1966171168
        %v1209 = vunpack.c.0.s8 %v1208
        %v1210 = vlaneseq
        %v1211 = vshrl.u32 %v1210, 7
        %v1212 = vsub.s32 %v1209, %v1211
        %v1213 = vrot.slane %v1205, %v1212
        %v1215 = vunpack.c.l.s4 1966171168
        %v1216 = vunpack.c.0.s8 %v1215
        %v1217 = vlaneseq
        %v1218 = vshrl.u32 %v1217, 7
        %v1219 = vsub.s32 %v1216, %v1218
        %v1220 = vrot.slane %v1206, %v1219
        %v1221 = vcombine.high %v1213, %v1213
        %v1222 = vcombine.high %v1220, %v1220
        %1224 = vset.pattern.permute.xlu0 0
        %1225 = vperm.xlu0 %1224, %v749
        %v1226 = vpop.permute.xlu0 %1225
        %1229 = vset.pattern.permute.xlu0 0
        %1230 = vperm.xlu0 %1229, %v751
        %v1231 = vpop.permute.xlu0 %1230
        %1234 = vset.pattern.permute.xlu0 0
        %1235 = vperm.xlu0 %1234, %v753
        %v1236 = vpop.permute.xlu0 %1235
        %1239 = vset.pattern.permute.xlu0 0
        %1240 = vperm.xlu0 %1239, %v755
        %v1241 = vpop.permute.xlu0 %1240
        %1244 = vset.pattern.permute.xlu0 0
        %1245 = vperm.xlu0 %1244, %v757
        %v1246 = vpop.permute.xlu0 %1245
        %1249 = vset.pattern.permute.xlu0 0
        %1250 = vperm.xlu0 %1249, %v759
        %v1251 = vpop.permute.xlu0 %1250
        %1254 = vset.pattern.permute.xlu0 0
        %1255 = vperm.xlu0 %1254, %v761
        %v1256 = vpop.permute.xlu0 %1255
        %1259 = vset.pattern.permute.xlu0 0
        %1260 = vperm.xlu0 %1259, %v763
        %v1261 = vpop.permute.xlu0 %1260
        %1264 = vset.pattern.permute.xlu0 0
        %1265 = vperm.xlu0 %1264, %v765
        %v1266 = vpop.permute.xlu0 %1265
        %1269 = vset.pattern.permute.xlu0 0
        %1270 = vperm.xlu0 %1269, %v767
        %v1271 = vpop.permute.xlu0 %1270
        %1274 = vset.pattern.permute.xlu0 0
        %1275 = vperm.xlu0 %1274, %v769
        %v1276 = vpop.permute.xlu0 %1275
        %1279 = vset.pattern.permute.xlu0 0
        %1280 = vperm.xlu0 %1279, %v771
        %v1281 = vpop.permute.xlu0 %1280
        %1284 = vset.pattern.permute.xlu0 0
        %1285 = vperm.xlu0 %1284, %v773
        %v1286 = vpop.permute.xlu0 %1285
        %1289 = vset.pattern.permute.xlu0 0
        %1290 = vperm.xlu0 %1289, %v775
        %v1291 = vpop.permute.xlu0 %1290
        %1294 = vset.pattern.permute.xlu0 0
        %1295 = vperm.xlu0 %1294, %v777
        %v1296 = vpop.permute.xlu0 %1295
        %1299 = vset.pattern.permute.xlu0 0
        %1300 = vperm.xlu0 %1299, %v779
        %v1301 = vpop.permute.xlu0 %1300
        %v1303 = vlaneseq
        %v1304 = vshrl.u32 %v1303, 7
        %v1305 = vsub.s32 0, %v1304
        %v1306 = vrot.slane %v1213, %v1305
        %v1307 = vlaneseq
        %v1308 = vshrl.u32 %v1307, 7
        %v1309 = vsub.s32 0, %v1308
        %v1310 = vrot.slane %v1220, %v1309
        %v1311 = vlaneseq
        %v1312 = vshrl.u32 %v1311, 7
        %v1313 = vsub.s32 0, %v1312
        %v1314 = vrot.slane %v1221, %v1313
        %v1315 = vlaneseq
        %v1316 = vshrl.u32 %v1315, 7
        %v1317 = vsub.s32 0, %v1316
        %v1318 = vrot.slane %v1222, %v1317
        %v1323 = vadd.f32 %v1226, %v1306
        %v1324 = vadd.f32 %v1231, %v1306
        %v1325 = vadd.f32 %v1236, %v1306
        %v1326 = vadd.f32 %v1241, %v1306
        %v1327 = vadd.f32 %v1246, %v1310
        %v1328 = vadd.f32 %v1251, %v1310
        %v1329 = vadd.f32 %v1256, %v1310
        %v1330 = vadd.f32 %v1261, %v1310
        %v1331 = vadd.f32 %v1266, %v1314
        %v1332 = vadd.f32 %v1271, %v1314
        %v1333 = vadd.f32 %v1276, %v1314
        %v1334 = vadd.f32 %v1281, %v1314
        %v1335 = vadd.f32 %v1286, %v1318
        %v1336 = vadd.f32 %v1291, %v1318
        %v1337 = vadd.f32 %v1296, %v1318
        %v1338 = vadd.f32 %v1301, %v1318
        %v1339 = vmul.f32 %v1323, %v302
        %v1340 = vmul.f32 %v1324, %v303
        %v1341 = vmul.f32 %v1325, %v304
        %v1342 = vmul.f32 %v1326, %v305
        %v1343 = vmul.f32 %v1327, %v306
        %v1344 = vmul.f32 %v1328, %v307
        %v1345 = vmul.f32 %v1329, %v308
        %v1346 = vmul.f32 %v1330, %v309
        %v1347 = vmul.f32 %v1331, %v310
        %v1348 = vmul.f32 %v1332, %v311
        %v1349 = vmul.f32 %v1333, %v312
        %v1350 = vmul.f32 %v1334, %v313
        %v1351 = vmul.f32 %v1335, %v314
        %v1352 = vmul.f32 %v1336, %v315
        %v1353 = vmul.f32 %v1337, %v316
        %v1354 = vmul.f32 %v1338, %v317
        %1355 = vst [vmem:[%s299] sm:$0xff] %v1339
        %1356 = vst [vmem:[%s299 + $0x8] sm:$0xff] %v1340
        %1357 = vst [vmem:[%s299 + $0x10] sm:$0xff] %v1341
        %1358 = vst [vmem:[%s299 + $0x18] sm:$0xff] %v1342
        %1359 = vst [vmem:[%s299 + $0x20] sm:$0xff] %v1343
        %1360 = vst [vmem:[%s299 + $0x28] sm:$0xff] %v1344
        %1361 = vst [vmem:[%s299 + $0x30] sm:$0xff] %v1345
        %1362 = vst [vmem:[%s299 + $0x38] sm:$0xff] %v1346
        %1363 = vst [vmem:[%s299 + $0x40] sm:$0xff] %v1347
        %1364 = vst [vmem:[%s299 + $0x48] sm:$0xff] %v1348
        %1365 = vst [vmem:[%s299 + $0x50] sm:$0xff] %v1349
        %1366 = vst [vmem:[%s299 + $0x58] sm:$0xff] %v1350
        %1367 = vst [vmem:[%s299 + $0x60] sm:$0xff] %v1351
        %1368 = vst [vmem:[%s299 + $0x68] sm:$0xff] %v1352
        %1369 = vst [vmem:[%s299 + $0x70] sm:$0xff] %v1353
        %1370 = vst [vmem:[%s299 + $0x78] sm:$0xff] %v1354
        %s1371 = sand.u32 %s186, 1
        %s1372 = scalar_lea.sflag [#allocation5], %s1371
        %s1373 = sand.u32 %s186, 1
        %s1374 = smul.addr %s1373, 128
        %s1375 = scalar_lea.vmem [#allocation6], %s1374
        // Predicated region
        $region53: #{tpu_custom_call.1} parent=47 // pred_check
          %p1376 = pneg %p196
        $region54: #{tpu_custom_call.1} parent=47 // pred_check_branch
          %1378 = sbr.rel (%p1376) target = $region56
        $region55: #{tpu_custom_call.1} parent=47 // pred_region
          %s1379 = smul.u32 4, %s26
          %s1381 = ssub.s32 2048, 2048
          %1382 = vsyncadd %s1372, %s1381
          %s1383 = smul.addr %s1379, 4
          %s1384 = smul.addr %s1383, 128
          %s1385 = scalar_lea.hbm %s7, %s1384
          %s1386 = sshll.u32 %s1375, 4
          %s1387 = int_to_ptr.vmem [resolvable:$true] %s1386
          %1392 = dma.vmem_to_hbm [thread:$0]  %s1387, 2048, %s1385, %s1372, 128, 128, 8
        $region56: #{tpu_custom_call.1} parent=47 // pred_fallthru
          _
      $region48: #{tpu_custom_call.1} parent=5 // pred_fallthru
        _
      %p1393 = scmp.le.s32.totalorder 2, %s21
      // Predicated region
      $region57: #{tpu_custom_call.1} parent=5 // pred_check
        %p1394 = pneg %p1393
      $region58: #{tpu_custom_call.1} parent=5 // pred_check_branch
        %1396 = sbr.rel (%p1394) target = $region60
      $region59: #{tpu_custom_call.1} parent=5 // pred_region
        %s1397 = ssub.s32 %s21, 2
        // Predicated region
        $region61: #{tpu_custom_call.1} parent=59 // pred_check
          %p1398 = pneg %p202
        $region62: #{tpu_custom_call.1} parent=59 // pred_check_branch
          %1400 = sbr.rel (%p1398) target = $region64
        $region63: #{tpu_custom_call.1} parent=59 // pred_region
          %s1401 = sand.u32 %s187, 1
          %s1402 = scalar_lea.sflag [#allocation5], %s1401
          %s1403 = sand.u32 %s187, 1
          %s1404 = smul.addr %s1403, 128
          %s1405 = scalar_lea.vmem [#allocation6], %s1404
          %1406 = dma.done %s1402, 2048
        $region64: #{tpu_custom_call.1} parent=59 // pred_fallthru
          _
      $region60: #{tpu_custom_call.1} parent=5 // pred_fallthru
        _
    $region6: #{tpu_custom_call.1} parent=1 // loop_footer
      %s25 = sadd.s32 1, %s21
    $region7: #{tpu_custom_call.1} parent=1 // loop_footer_branch
      %20 = sbr.rel target = $region3
    $region8: #{tpu_custom_call.1} parent=1 // loop_exit
      _
    %1407 = vsyncpa [#allocation4], 1
    %s1408 = scalar_lea.sflag [#allocation4], 1
    %1409 = vsyncpa %s1408, 1
    %1410 = vsyncpa [#allocation5], 1
    %s1411 = scalar_lea.sflag [#allocation5], 1
    %1412 = vsyncpa %s1411, 1

</llo_original>
